<compile_context>
chip_gen: v5e
topology: v5e:2x2
jax: 0.10.0
libtpu: 0.0.40
codegen_flags: <defaults>
</compile_context>

<pallas_src>
import functools

import jax
import jax.numpy as jnp
from jax.experimental import pallas as pl
from jax.experimental.pallas import tpu as pltpu

MXU_OPERAND_DTYPE = jnp.bfloat16  # flip to jnp.float32 for bit-closer numerics


def _round_up(x, m):
    return ((x + m - 1) // m) * m


def _pick_batch_block(n, max_block=16):
    """Largest divisor of n (<= max_block) that still leaves >= 2 grid steps
    (so v7x megacore gets work on both TensorCores)."""
    divisors = [b for b in range(1, n + 1) if n % b == 0 and b <= max_block]
    parallel = [b for b in divisors if n // b >= 2]
    return max(parallel) if parallel else max(divisors)


# ----------------------------------------------------------------------------
# Fused kernel: conv stack (+bias+ReLU) + permuted single-dot Linear for a
# block of B_blk batch elements per grid step.  Everything stays in VMEM; only
# the (1, B_blk, LP) result block goes back to HBM.
# ----------------------------------------------------------------------------
def _make_fused_encoder_kernel(B_blk, H, W, ksizes, cps, operand_dtype):
    n_conv = len(ksizes)

    def kernel(*refs):
        x_ref = refs[0]                                  # (B, H+2p0, W*c0p) f32
        conv_refs = refs[1:1 + 2 * n_conv]               # (w_i, b_i) pairs
        wl_ref = refs[1 + 2 * n_conv]                    # (H*W*cLp, LP)
        bl_ref = refs[2 + 2 * n_conv]                    # (1, LP) f32
        out_ref = refs[3 + 2 * n_conv]                   # (1, B, LP) f32
        act_refs = refs[4 + 2 * n_conv:4 + 3 * n_conv]   # one per conv layer
        lin_ref = refs[4 + 3 * n_conv]                   # (B, H*W*cLp) f32

        cur_ref = x_ref
        for li in range(n_conv):
            w_ref = conv_refs[2 * li]                    # (K, W*cin_p, W*cout_p)
            b_ref = conv_refs[2 * li + 1]                # (1, W*cout_p) f32
            K = ksizes[li]
            j_in = W * cps[li]
            j_out = W * cps[li + 1]

            # Banded conv: K dots of (B*H, W*cin_p) x (W*cin_p, W*cout_p).
            # The kx offsets (and the horizontal 'same' zero padding) live in
            # the banded weight, so every operand is fully 128-lane aligned.
            acc = jnp.zeros((B_blk * H, j_out), jnp.float32)
            for ky in range(K):
                patch = cur_ref[:, ky:ky + H, :]                    # f32
                patch = patch.reshape(B_blk * H, j_in).astype(operand_dtype)
                acc = acc + jnp.dot(patch, w_ref[ky],
                                    preferred_element_type=jnp.float32)
            act = jnp.maximum(acc + b_ref[...], 0.0)                # f32 epilogue

            p_nxt = (ksizes[li + 1] - 1) // 2 if li + 1 < n_conv else 0
            buf = act_refs[li]                    # (B, H+2*p_nxt, j_out) f32
            if p_nxt > 0:
                # Zero only the halo rows (cheap; done every step on purpose:
                # scratch is uninitialized per core and a program_id==0 gate
                # would miss the second TensorCore under megacore sharding).
                zeros = jnp.zeros((B_blk, p_nxt, j_out), jnp.float32)
                buf[:, :p_nxt, :] = zeros
                buf[:, p_nxt + H:, :] = zeros
            buf[:, p_nxt:p_nxt + H, :] = act.reshape(B_blk, H, j_out)
            cur_ref = buf

        # Flatten (b, h, w, c) -> (b, h*W*cLp + w*cLp + c): H lane-offset
        # copies at multiples of 128.  The PyTorch NCHW flatten order was
        # folded into the Linear weight's column permutation at pack time.
        j_last = W * cps[-1]
        last = act_refs[-1]                               # (B, H, j_last) f32
        for h in range(H):
            lin_ref[:, h * j_last:(h + 1) * j_last] = last[:, h, :]

        # Linear: ONE MXU dot with a (H*W*cLp)-deep contraction instead of H
        # serial M=1 dots; bias add + padded-latent columns handled in f32.
        flat = lin_ref[...].astype(operand_dtype)         # (B, H*W*cLp)
        out = jnp.dot(flat, wl_ref[...],
                      preferred_element_type=jnp.float32) + bl_ref[...]
        out_ref[0] = out

    return kernel


# ----------------------------------------------------------------------------
# One-time parameter packing (host/XLA side, layout plumbing only)
# ----------------------------------------------------------------------------
def pack_encoder_params(params, dimn_tensor, operand_dtype=MXU_OPERAND_DTYPE):
    _, C, H, W = dimn_tensor
    convs = params["convs"]
    wl, bl = params["linear"]
    latent = int(wl.shape[0])

    ksizes = tuple(int(K) for (_, _, K) in convs)
    chans = [int(C)] + [int(w.shape[0]) for (w, _, _) in convs]
    cps = tuple(_round_up(c, 8) for c in chans)     # channel pad (x8 sublanes)
    LP = _round_up(latent, 128)                     # lane-dense output width

    conv_w, conv_b = [], []
    for li, (w, b, K) in enumerate(convs):
        assert K % 2 == 1, "'same' padding requires an odd kernel size"
        p = (K - 1) // 2
        cout, cin = int(w.shape[0]), int(w.shape[1])
        cin_p, cout_p = cps[li], cps[li + 1]
        # w[co, ci, ky, kx] -> ws[ky, kx, ci, co], channel-padded with zeros.
        ws = jnp.zeros((K, K, cin_p, cout_p), jnp.float32)
        ws = ws.at[:, :, :cin, :cout].set(jnp.transpose(w, (2, 3, 1, 0)))
        # Fold kx into K banded (W*cin_p, W*cout_p) matrices:
        #   banded[ky][w_in*cin_p+ci, w_out*cout_p+co] = w[co,ci,ky, w_in-w_out+p]
        # The band clipping at the edges also implements the horizontal zero
        # padding, so the kernel needs no horizontal halo and only K dots/layer.
        banded = []
        for ky in range(K):
            m = jnp.zeros((W * cin_p, W * cout_p), jnp.float32)
            for kx in range(K):
                m = m + jnp.kron(jnp.eye(W, k=p - kx, dtype=jnp.float32),
                                 ws[ky, kx])
            banded.append(m)
        conv_w.append(jnp.stack(banded, axis=0).astype(operand_dtype))
        bp = jnp.zeros((cout_p,), jnp.float32).at[:cout].set(b)
        conv_b.append(jnp.tile(bp, W).reshape(1, W * cout_p))

    # Linear weight: fold the NCHW flatten (c*H*W + h*W + w) into a column
    # permutation and pack as one (H*W*cLp, LP) matrix for a single-dot Linear.
    cL, cLp = chans[-1], cps[-1]
    wl4 = jnp.transpose(wl.reshape(latent, cL, H, W), (2, 3, 1, 0))  # (H,W,c,l)
    wlk = jnp.zeros((H, W, cLp, LP), jnp.float32).at[:, :, :cL, :latent].set(wl4)
    wlk = wlk.reshape(H * W * cLp, LP).astype(operand_dtype)
    blk = jnp.zeros((1, LP), jnp.float32).at[0, :latent].set(bl)

    packed = {"conv_w": tuple(conv_w), "conv_b": tuple(conv_b),
              "wl": wlk, "bl": blk}
    config = (int(H), int(W), ksizes, cps, int(LP), latent)
    return packed, config


# ----------------------------------------------------------------------------
# Forward pass
# ----------------------------------------------------------------------------
@functools.partial(jax.jit, static_argnums=(2,))
def encoder_2d_forward(x, packed, config):
    H, W, ksizes, cps, LP, latent = config
    N, C = int(x.shape[0]), int(x.shape[1])
    n_conv = len(ksizes)
    p0 = (ksizes[0] - 1) // 2
    operand_dtype = packed["wl"].dtype

    B_blk = _pick_batch_block(N)
    G = N // B_blk

    # NCHW -> lane-dense (N, H + 2*p0, W*c0p): channel pad, NHWC, vertical halo.
    # TODO(synk): fold this host-side repack into the kernel (raw NCHW read via
    # BlockSpec, halo built in VMEM) if N or H*W ever get large.
    xp = jnp.pad(x.astype(jnp.float32),
                 ((0, 0), (0, cps[0] - C), (0, 0), (0, 0)))
    xp = jnp.transpose(xp, (0, 2, 3, 1))
    xp = jnp.pad(xp, ((0, 0), (p0, p0), (0, 0), (0, 0)))
    xp = xp.reshape(N, H + 2 * p0, W * cps[0])

    inputs = [xp]
    in_specs = [pl.BlockSpec((B_blk, H + 2 * p0, W * cps[0]),
                             lambda n: (n, 0, 0))]
    for li in range(n_conv):
        inputs.append(packed["conv_w"][li])
        in_specs.append(pl.BlockSpec(
            (ksizes[li], W * cps[li], W * cps[li + 1]), lambda n: (0, 0, 0)))
        inputs.append(packed["conv_b"][li])
        in_specs.append(pl.BlockSpec((1, W * cps[li + 1]), lambda n: (0, 0)))
    inputs.append(packed["wl"])
    in_specs.append(pl.BlockSpec((H * W * cps[-1], LP), lambda n: (0, 0)))
    inputs.append(packed["bl"])
    in_specs.append(pl.BlockSpec((1, LP), lambda n: (0, 0)))

    # Scratch: one activation buffer per conv layer (vertical halo only) plus
    # the flat (B_blk, H*W*cLp) Linear input.  Total VMEM ~= 1-2 MiB.
    scratch = []
    for li in range(n_conv):
        p_nxt = (ksizes[li + 1] - 1) // 2 if li + 1 < n_conv else 0
        scratch.append(pltpu.VMEM(
            (B_blk, H + 2 * p_nxt, W * cps[li + 1]), jnp.float32))
    scratch.append(pltpu.VMEM((B_blk, H * W * cps[-1]), jnp.float32))

    kernel = _make_fused_encoder_kernel(B_blk, H, W, ksizes, cps, operand_dtype)

    out = pl.pallas_call(
        kernel,
        out_shape=jax.ShapeDtypeStruct((G, B_blk, LP), jnp.float32),
        grid_spec=pltpu.PrefetchScalarGridSpec(
            num_scalar_prefetch=0,
            grid=(G,),
            in_specs=in_specs,
            out_specs=pl.BlockSpec((1, B_blk, LP), lambda n: (n, 0, 0)),
            scratch_shapes=scratch,
        ),
        compiler_params=pltpu.CompilerParams(
            dimension_semantics=("parallel",)),
    )(*inputs)

    return out.reshape(N, LP)[:, :latent].reshape(N, 1, latent)


# ----------------------------------------------------------------------------
# Parameter construction (mimics the PyTorch __init__)
# ----------------------------------------------------------------------------
def init_encoder_params(key, dimn_tensor, hidden_layers_list, ksize,
                        latent_space_dimn):
    _, channels, nX, nY = dimn_tensor
    assert hidden_layers_list[0] == channels
    n_layers = len(hidden_layers_list) - 1
    params = {"convs": [], "linear": None}
    keys = jax.random.split(key, 2 * n_layers + 2)

    for i in range(n_layers):
        cin, cout, K = hidden_layers_list[i], hidden_layers_list[i + 1], ksize[i]
        fan_in, fan_out = cin * K * K, cout * K * K
        bound_w = (6.0 / (fan_in + fan_out)) ** 0.5          # xavier_uniform_
        w = jax.random.uniform(keys[2 * i], (cout, cin, K, K),
                               minval=-bound_w, maxval=bound_w,
                               dtype=jnp.float32)
        bound_b = 1.0 / (fan_in ** 0.5)                      # Conv2d default bias
        b = jax.random.uniform(keys[2 * i + 1], (cout,),
                               minval=-bound_b, maxval=bound_b,
                               dtype=jnp.float32)
        params["convs"].append((w, b, K))

    in_feat = nX * nY * hidden_layers_list[-1]
    bound_w = (6.0 / (in_feat + latent_space_dimn)) ** 0.5
    wl = jax.random.uniform(keys[-2], (latent_space_dimn, in_feat),
                            minval=-bound_w, maxval=bound_w, dtype=jnp.float32)
    bound_b = 1.0 / (in_feat ** 0.5)
    bl = jax.random.uniform(keys[-1], (latent_space_dimn,),
                            minval=-bound_b, maxval=bound_b, dtype=jnp.float32)
    params["linear"] = (wl, bl)
    return params


# Pure-JAX reference.  `operand_dtype` mirrors the kernel's MXU operand casts
# (bf16 multiplies, f32 accumulation) so the tight comparison isolates
# layout/permutation bugs from bf16 rounding noise.
def _reference_forward(x, params, operand_dtype=jnp.float32):
    od = operand_dtype
    hi = jax.lax.Precision.HIGHEST
    y = x
    for (w, b, K) in params["convs"]:
        pad = (K - 1) // 2
        y = jax.lax.conv_general_dilated(
            y.astype(od), w.astype(od), window_strides=(1, 1),
            padding=((pad, pad), (pad, pad)),
            dimension_numbers=("NCHW", "OIHW", "NCHW"),
            preferred_element_type=jnp.float32, precision=hi)
        y = jnp.maximum(y + b[None, :, None, None], 0.0)
    n = y.shape[0]
    wl, bl = params["linear"]
    out = jnp.dot(y.reshape(n, -1).astype(od), wl.T.astype(od),
                  preferred_element_type=jnp.float32, precision=hi) + bl
    return out.reshape(n, 1, -1)


if __name__ == "__main__":
    # dimn_tensor = [batch, channels, nX, nY].  batch=8 exercises the
    # batch-blocked grid (B_blk=4, grid=(2,)) and the megacore path.
    dimn_tensor = [8, 4, 16, 16]
    hidden_layers_list = [4, 8, 8]   # first entry equals input channels
    ksize = [3, 3]
    latent_space_dimn = 32

    key = jax.random.PRNGKey(0)
    k_params, k_input = jax.random.split(key)

    params = init_encoder_params(k_params, dimn_tensor, hidden_layers_list,
                                 ksize, latent_space_dimn)
    packed, config = pack_encoder_params(params, dimn_tensor)

    x = jax.random.normal(k_input, tuple(dimn_tensor), dtype=jnp.float32)

    out = jax.block_until_ready(encoder_2d_forward(x, packed, config))

    assert out.shape == (dimn_tensor[0], 1, latent_space_dimn), out.shape
    assert out.dtype == jnp.float32

    # Tight check vs. a reference that mirrors the kernel's operand casts
    # (catches layout / permutation bugs independently of bf16 noise) ...
    ref_mirrored = _reference_forward(x, params, MXU_OPERAND_DTYPE)
    err_m = float(jnp.max(jnp.abs(out - ref_mirrored)))
    assert err_m < 2e-2, f"max abs error vs dtype-mirrored reference: {err_m}"

    # ... plus a loose end-to-end check vs. the full-f32 reference.
    ref_f32 = _reference_forward(x, params, jnp.float32)
    err_f = float(jnp.max(jnp.abs(out - ref_f32)))
    assert err_f < 1e-1, f"max abs error vs f32 reference: {err_f}"

    print("KERNEL_OK")
</pallas_src>

<mosaic_0001>
module attributes {stable_mosaic.version = 11 : i64} {
  func.func @kernel(%arg0: i32, %arg1: memref<4x18x128xf32, #tpu.memory_space<vmem>>, %arg2: memref<3x128x128xbf16, #tpu.memory_space<vmem>>, %arg3: memref<1x128xf32, #tpu.memory_space<vmem>>, %arg4: memref<3x128x128xbf16, #tpu.memory_space<vmem>>, %arg5: memref<1x128xf32, #tpu.memory_space<vmem>>, %arg6: memref<2048x128xbf16, #tpu.memory_space<vmem>>, %arg7: memref<1x128xf32, #tpu.memory_space<vmem>>, %arg8: memref<1x4x128xf32, #tpu.memory_space<vmem>>, %arg9: memref<4x18x128xf32, #tpu.memory_space<vmem>>, %arg10: memref<4x16x128xf32, #tpu.memory_space<vmem>>, %arg11: memref<4x2048xf32, #tpu.memory_space<vmem>>) attributes {dimension_semantics = [#tpu.dimension_semantics<parallel>], iteration_bounds = array<i64: 2>, scalar_prefetch = 0 : i64, scratch_operands = 3 : i64, tpu.core_type = #tpu.core_type<tc>, window_params = [{transform_indices = @transform_0, window_bounds = array<i64: 4, 18, 128>}, {pipeline_mode = #tpu.pipeline_mode<synchronous>, transform_indices = @transform_1, window_bounds = array<i64: 3, 128, 128>}, {pipeline_mode = #tpu.pipeline_mode<synchronous>, transform_indices = @transform_2, window_bounds = array<i64: 1, 128>}, {pipeline_mode = #tpu.pipeline_mode<synchronous>, transform_indices = @transform_3, window_bounds = array<i64: 3, 128, 128>}, {pipeline_mode = #tpu.pipeline_mode<synchronous>, transform_indices = @transform_4, window_bounds = array<i64: 1, 128>}, {pipeline_mode = #tpu.pipeline_mode<synchronous>, transform_indices = @transform_5, window_bounds = array<i64: 2048, 128>}, {pipeline_mode = #tpu.pipeline_mode<synchronous>, transform_indices = @transform_6, window_bounds = array<i64: 1, 128>}, {transform_indices = @transform_7, window_bounds = array<i64: 1, 4, 128>}]} {
    %cst = arith.constant 0.000000e+00 : f32
    %0 = vector.broadcast %cst : f32 to vector<64x128xf32>
    %c0 = arith.constant 0 : index
    %c0_0 = arith.constant 0 : index
    %c0_1 = arith.constant 0 : index
    %1 = vector.load %arg1[%c0, %c0_0, %c0_1] : memref<4x18x128xf32, #tpu.memory_space<vmem>>, vector<4x16x128xf32>
    %2 = vector.shape_cast %1 : vector<4x16x128xf32> to vector<64x128xf32>
    %3 = arith.truncf %2 : vector<64x128xf32> to vector<64x128xbf16>
    %c0_2 = arith.constant 0 : index
    %c0_3 = arith.constant 0 : index
    %c0_4 = arith.constant 0 : index
    %4 = vector.load %arg2[%c0_2, %c0_3, %c0_4] : memref<3x128x128xbf16, #tpu.memory_space<vmem>>, vector<1x128x128xbf16>
    %5 = vector.shape_cast %4 : vector<1x128x128xbf16> to vector<128x128xbf16>
    %cst_5 = arith.constant dense<0.000000e+00> : vector<64x128xf32>
    %6 = tpu.matmul %3, %5, %cst_5 {dimension_numbers = #tpu.dot_dimension_numbers<[1], [0], [0], [1], [0, 0, 1, 1], [], []>} : vector<64x128xbf16>, vector<128x128xbf16>, vector<64x128xf32> -> vector<64x128xf32>
    %7 = arith.addf %0, %6 : vector<64x128xf32>
    %c0_6 = arith.constant 0 : index
    %c1 = arith.constant 1 : index
    %c0_7 = arith.constant 0 : index
    %8 = vector.load %arg1[%c0_6, %c1, %c0_7] : memref<4x18x128xf32, #tpu.memory_space<vmem>>, vector<4x16x128xf32>
    %9 = vector.shape_cast %8 : vector<4x16x128xf32> to vector<64x128xf32>
    %10 = arith.truncf %9 : vector<64x128xf32> to vector<64x128xbf16>
    %c1_8 = arith.constant 1 : index
    %c0_9 = arith.constant 0 : index
    %c0_10 = arith.constant 0 : index
    %11 = vector.load %arg2[%c1_8, %c0_9, %c0_10] : memref<3x128x128xbf16, #tpu.memory_space<vmem>>, vector<1x128x128xbf16>
    %12 = vector.shape_cast %11 : vector<1x128x128xbf16> to vector<128x128xbf16>
    %cst_11 = arith.constant dense<0.000000e+00> : vector<64x128xf32>
    %13 = tpu.matmul %10, %12, %cst_11 {dimension_numbers = #tpu.dot_dimension_numbers<[1], [0], [0], [1], [0, 0, 1, 1], [], []>} : vector<64x128xbf16>, vector<128x128xbf16>, vector<64x128xf32> -> vector<64x128xf32>
    %14 = arith.addf %7, %13 : vector<64x128xf32>
    %c0_12 = arith.constant 0 : index
    %c2 = arith.constant 2 : index
    %c0_13 = arith.constant 0 : index
    %15 = vector.load %arg1[%c0_12, %c2, %c0_13] : memref<4x18x128xf32, #tpu.memory_space<vmem>>, vector<4x16x128xf32>
    %16 = vector.shape_cast %15 : vector<4x16x128xf32> to vector<64x128xf32>
    %17 = arith.truncf %16 : vector<64x128xf32> to vector<64x128xbf16>
    %c2_14 = arith.constant 2 : index
    %c0_15 = arith.constant 0 : index
    %c0_16 = arith.constant 0 : index
    %18 = vector.load %arg2[%c2_14, %c0_15, %c0_16] : memref<3x128x128xbf16, #tpu.memory_space<vmem>>, vector<1x128x128xbf16>
    %19 = vector.shape_cast %18 : vector<1x128x128xbf16> to vector<128x128xbf16>
    %cst_17 = arith.constant dense<0.000000e+00> : vector<64x128xf32>
    %20 = tpu.matmul %17, %19, %cst_17 {dimension_numbers = #tpu.dot_dimension_numbers<[1], [0], [0], [1], [0, 0, 1, 1], [], []>} : vector<64x128xbf16>, vector<128x128xbf16>, vector<64x128xf32> -> vector<64x128xf32>
    %21 = arith.addf %14, %20 : vector<64x128xf32>
    %c0_18 = arith.constant 0 : index
    %c0_19 = arith.constant 0 : index
    %22 = vector.load %arg3[%c0_18, %c0_19] : memref<1x128xf32, #tpu.memory_space<vmem>>, vector<1x128xf32>
    %23 = vector.broadcast %22 : vector<1x128xf32> to vector<64x128xf32>
    %24 = arith.addf %21, %23 : vector<64x128xf32>
    %cst_20 = arith.constant 0.000000e+00 : f32
    %25 = vector.broadcast %cst_20 : f32 to vector<64x128xf32>
    %26 = arith.maximumf %24, %25 : vector<64x128xf32>
    %cst_21 = arith.constant 0.000000e+00 : f32
    %27 = vector.broadcast %cst_21 : f32 to vector<4x1x128xf32>
    %c0_22 = arith.constant 0 : index
    %c0_23 = arith.constant 0 : index
    %c0_24 = arith.constant 0 : index
    %28 = vector.load %arg9[%c0_22, %c0_23, %c0_24] : memref<4x18x128xf32, #tpu.memory_space<vmem>>, vector<4x1x128xf32>
    tpu.vector_store %arg9[%c0_22, %c0_23, %c0_24], %27 {strides = array<i32>} : memref<4x18x128xf32, #tpu.memory_space<vmem>>, vector<4x1x128xf32>,
    %c0_25 = arith.constant 0 : index
    %c17 = arith.constant 17 : index
    %c0_26 = arith.constant 0 : index
    %29 = vector.load %arg9[%c0_25, %c17, %c0_26] : memref<4x18x128xf32, #tpu.memory_space<vmem>>, vector<4x1x128xf32>
    tpu.vector_store %arg9[%c0_25, %c17, %c0_26], %27 {strides = array<i32>} : memref<4x18x128xf32, #tpu.memory_space<vmem>>, vector<4x1x128xf32>,
    %30 = vector.shape_cast %26 : vector<64x128xf32> to vector<4x16x128xf32>
    %c0_27 = arith.constant 0 : index
    %c1_28 = arith.constant 1 : index
    %c0_29 = arith.constant 0 : index
    %31 = vector.load %arg9[%c0_27, %c1_28, %c0_29] : memref<4x18x128xf32, #tpu.memory_space<vmem>>, vector<4x16x128xf32>
    tpu.vector_store %arg9[%c0_27, %c1_28, %c0_29], %30 {strides = array<i32>} : memref<4x18x128xf32, #tpu.memory_space<vmem>>, vector<4x16x128xf32>,
    %cst_30 = arith.constant 0.000000e+00 : f32
    %32 = vector.broadcast %cst_30 : f32 to vector<64x128xf32>
    %c0_31 = arith.constant 0 : index
    %c0_32 = arith.constant 0 : index
    %c0_33 = arith.constant 0 : index
    %33 = vector.load %arg9[%c0_31, %c0_32, %c0_33] : memref<4x18x128xf32, #tpu.memory_space<vmem>>, vector<4x16x128xf32>
    %34 = vector.shape_cast %33 : vector<4x16x128xf32> to vector<64x128xf32>
    %35 = arith.truncf %34 : vector<64x128xf32> to vector<64x128xbf16>
    %c0_34 = arith.constant 0 : index
    %c0_35 = arith.constant 0 : index
    %c0_36 = arith.constant 0 : index
    %36 = vector.load %arg4[%c0_34, %c0_35, %c0_36] : memref<3x128x128xbf16, #tpu.memory_space<vmem>>, vector<1x128x128xbf16>
    %37 = vector.shape_cast %36 : vector<1x128x128xbf16> to vector<128x128xbf16>
    %cst_37 = arith.constant dense<0.000000e+00> : vector<64x128xf32>
    %38 = tpu.matmul %35, %37, %cst_37 {dimension_numbers = #tpu.dot_dimension_numbers<[1], [0], [0], [1], [0, 0, 1, 1], [], []>} : vector<64x128xbf16>, vector<128x128xbf16>, vector<64x128xf32> -> vector<64x128xf32>
    %39 = arith.addf %32, %38 : vector<64x128xf32>
    %c0_38 = arith.constant 0 : index
    %c1_39 = arith.constant 1 : index
    %c0_40 = arith.constant 0 : index
    %40 = vector.load %arg9[%c0_38, %c1_39, %c0_40] : memref<4x18x128xf32, #tpu.memory_space<vmem>>, vector<4x16x128xf32>
    %41 = vector.shape_cast %40 : vector<4x16x128xf32> to vector<64x128xf32>
    %42 = arith.truncf %41 : vector<64x128xf32> to vector<64x128xbf16>
    %c1_41 = arith.constant 1 : index
    %c0_42 = arith.constant 0 : index
    %c0_43 = arith.constant 0 : index
    %43 = vector.load %arg4[%c1_41, %c0_42, %c0_43] : memref<3x128x128xbf16, #tpu.memory_space<vmem>>, vector<1x128x128xbf16>
    %44 = vector.shape_cast %43 : vector<1x128x128xbf16> to vector<128x128xbf16>
    %cst_44 = arith.constant dense<0.000000e+00> : vector<64x128xf32>
    %45 = tpu.matmul %42, %44, %cst_44 {dimension_numbers = #tpu.dot_dimension_numbers<[1], [0], [0], [1], [0, 0, 1, 1], [], []>} : vector<64x128xbf16>, vector<128x128xbf16>, vector<64x128xf32> -> vector<64x128xf32>
    %46 = arith.addf %39, %45 : vector<64x128xf32>
    %c0_45 = arith.constant 0 : index
    %c2_46 = arith.constant 2 : index
    %c0_47 = arith.constant 0 : index
    %47 = vector.load %arg9[%c0_45, %c2_46, %c0_47] : memref<4x18x128xf32, #tpu.memory_space<vmem>>, vector<4x16x128xf32>
    %48 = vector.shape_cast %47 : vector<4x16x128xf32> to vector<64x128xf32>
    %49 = arith.truncf %48 : vector<64x128xf32> to vector<64x128xbf16>
    %c2_48 = arith.constant 2 : index
    %c0_49 = arith.constant 0 : index
    %c0_50 = arith.constant 0 : index
    %50 = vector.load %arg4[%c2_48, %c0_49, %c0_50] : memref<3x128x128xbf16, #tpu.memory_space<vmem>>, vector<1x128x128xbf16>
    %51 = vector.shape_cast %50 : vector<1x128x128xbf16> to vector<128x128xbf16>
    %cst_51 = arith.constant dense<0.000000e+00> : vector<64x128xf32>
    %52 = tpu.matmul %49, %51, %cst_51 {dimension_numbers = #tpu.dot_dimension_numbers<[1], [0], [0], [1], [0, 0, 1, 1], [], []>} : vector<64x128xbf16>, vector<128x128xbf16>, vector<64x128xf32> -> vector<64x128xf32>
    %53 = arith.addf %46, %52 : vector<64x128xf32>
    %c0_52 = arith.constant 0 : index
    %c0_53 = arith.constant 0 : index
    %54 = vector.load %arg5[%c0_52, %c0_53] : memref<1x128xf32, #tpu.memory_space<vmem>>, vector<1x128xf32>
    %55 = vector.broadcast %54 : vector<1x128xf32> to vector<64x128xf32>
    %56 = arith.addf %53, %55 : vector<64x128xf32>
    %cst_54 = arith.constant 0.000000e+00 : f32
    %57 = vector.broadcast %cst_54 : f32 to vector<64x128xf32>
    %58 = arith.maximumf %56, %57 : vector<64x128xf32>
    %59 = vector.shape_cast %58 : vector<64x128xf32> to vector<4x16x128xf32>
    %c0_55 = arith.constant 0 : index
    %c0_56 = arith.constant 0 : index
    %c0_57 = arith.constant 0 : index
    %60 = vector.load %arg10[%c0_55, %c0_56, %c0_57] : memref<4x16x128xf32, #tpu.memory_space<vmem>>, vector<4x16x128xf32>
    tpu.vector_store %arg10[%c0_55, %c0_56, %c0_57], %59 {strides = array<i32>} : memref<4x16x128xf32, #tpu.memory_space<vmem>>, vector<4x16x128xf32>,
    %c0_58 = arith.constant 0 : index
    %c0_59 = arith.constant 0 : index
    %c0_60 = arith.constant 0 : index
    %61 = vector.load %arg10[%c0_58, %c0_59, %c0_60] : memref<4x16x128xf32, #tpu.memory_space<vmem>>, vector<4x1x128xf32>
    %62 = vector.shape_cast %61 : vector<4x1x128xf32> to vector<4x128xf32>
    %c0_61 = arith.constant 0 : index
    %c0_62 = arith.constant 0 : index
    %63 = vector.load %arg11[%c0_61, %c0_62] : memref<4x2048xf32, #tpu.memory_space<vmem>>, vector<4x128xf32>
    tpu.vector_store %arg11[%c0_61, %c0_62], %62 {strides = array<i32>} : memref<4x2048xf32, #tpu.memory_space<vmem>>, vector<4x128xf32>,
    %c0_63 = arith.constant 0 : index
    %c1_64 = arith.constant 1 : index
    %c0_65 = arith.constant 0 : index
    %64 = vector.load %arg10[%c0_63, %c1_64, %c0_65] : memref<4x16x128xf32, #tpu.memory_space<vmem>>, vector<4x1x128xf32>
    %65 = vector.shape_cast %64 : vector<4x1x128xf32> to vector<4x128xf32>
    %c0_66 = arith.constant 0 : index
    %c128 = arith.constant 128 : index
    %66 = vector.load %arg11[%c0_66, %c128] : memref<4x2048xf32, #tpu.memory_space<vmem>>, vector<4x128xf32>
    tpu.vector_store %arg11[%c0_66, %c128], %65 {strides = array<i32>} : memref<4x2048xf32, #tpu.memory_space<vmem>>, vector<4x128xf32>,
    %c0_67 = arith.constant 0 : index
    %c2_68 = arith.constant 2 : index
    %c0_69 = arith.constant 0 : index
    %67 = vector.load %arg10[%c0_67, %c2_68, %c0_69] : memref<4x16x128xf32, #tpu.memory_space<vmem>>, vector<4x1x128xf32>
    %68 = vector.shape_cast %67 : vector<4x1x128xf32> to vector<4x128xf32>
    %c0_70 = arith.constant 0 : index
    %c256 = arith.constant 256 : index
    %69 = vector.load %arg11[%c0_70, %c256] : memref<4x2048xf32, #tpu.memory_space<vmem>>, vector<4x128xf32>
    tpu.vector_store %arg11[%c0_70, %c256], %68 {strides = array<i32>} : memref<4x2048xf32, #tpu.memory_space<vmem>>, vector<4x128xf32>,
    %c0_71 = arith.constant 0 : index
    %c3 = arith.constant 3 : index
    %c0_72 = arith.constant 0 : index
    %70 = vector.load %arg10[%c0_71, %c3, %c0_72] : memref<4x16x128xf32, #tpu.memory_space<vmem>>, vector<4x1x128xf32>
    %71 = vector.shape_cast %70 : vector<4x1x128xf32> to vector<4x128xf32>
    %c0_73 = arith.constant 0 : index
    %c384 = arith.constant 384 : index
    %72 = vector.load %arg11[%c0_73, %c384] : memref<4x2048xf32, #tpu.memory_space<vmem>>, vector<4x128xf32>
    tpu.vector_store %arg11[%c0_73, %c384], %71 {strides = array<i32>} : memref<4x2048xf32, #tpu.memory_space<vmem>>, vector<4x128xf32>,
    %c0_74 = arith.constant 0 : index
    %c4 = arith.constant 4 : index
    %c0_75 = arith.constant 0 : index
    %73 = vector.load %arg10[%c0_74, %c4, %c0_75] : memref<4x16x128xf32, #tpu.memory_space<vmem>>, vector<4x1x128xf32>
    %74 = vector.shape_cast %73 : vector<4x1x128xf32> to vector<4x128xf32>
    %c0_76 = arith.constant 0 : index
    %c512 = arith.constant 512 : index
    %75 = vector.load %arg11[%c0_76, %c512] : memref<4x2048xf32, #tpu.memory_space<vmem>>, vector<4x128xf32>
    tpu.vector_store %arg11[%c0_76, %c512], %74 {strides = array<i32>} : memref<4x2048xf32, #tpu.memory_space<vmem>>, vector<4x128xf32>,
    %c0_77 = arith.constant 0 : index
    %c5 = arith.constant 5 : index
    %c0_78 = arith.constant 0 : index
    %76 = vector.load %arg10[%c0_77, %c5, %c0_78] : memref<4x16x128xf32, #tpu.memory_space<vmem>>, vector<4x1x128xf32>
    %77 = vector.shape_cast %76 : vector<4x1x128xf32> to vector<4x128xf32>
    %c0_79 = arith.constant 0 : index
    %c640 = arith.constant 640 : index
    %78 = vector.load %arg11[%c0_79, %c640] : memref<4x2048xf32, #tpu.memory_space<vmem>>, vector<4x128xf32>
    tpu.vector_store %arg11[%c0_79, %c640], %77 {strides = array<i32>} : memref<4x2048xf32, #tpu.memory_space<vmem>>, vector<4x128xf32>,
    %c0_80 = arith.constant 0 : index
    %c6 = arith.constant 6 : index
    %c0_81 = arith.constant 0 : index
    %79 = vector.load %arg10[%c0_80, %c6, %c0_81] : memref<4x16x128xf32, #tpu.memory_space<vmem>>, vector<4x1x128xf32>
    %80 = vector.shape_cast %79 : vector<4x1x128xf32> to vector<4x128xf32>
    %c0_82 = arith.constant 0 : index
    %c768 = arith.constant 768 : index
    %81 = vector.load %arg11[%c0_82, %c768] : memref<4x2048xf32, #tpu.memory_space<vmem>>, vector<4x128xf32>
    tpu.vector_store %arg11[%c0_82, %c768], %80 {strides = array<i32>} : memref<4x2048xf32, #tpu.memory_space<vmem>>, vector<4x128xf32>,
    %c0_83 = arith.constant 0 : index
    %c7 = arith.constant 7 : index
    %c0_84 = arith.constant 0 : index
    %82 = vector.load %arg10[%c0_83, %c7, %c0_84] : memref<4x16x128xf32, #tpu.memory_space<vmem>>, vector<4x1x128xf32>
    %83 = vector.shape_cast %82 : vector<4x1x128xf32> to vector<4x128xf32>
    %c0_85 = arith.constant 0 : index
    %c896 = arith.constant 896 : index
    %84 = vector.load %arg11[%c0_85, %c896] : memref<4x2048xf32, #tpu.memory_space<vmem>>, vector<4x128xf32>
    tpu.vector_store %arg11[%c0_85, %c896], %83 {strides = array<i32>} : memref<4x2048xf32, #tpu.memory_space<vmem>>, vector<4x128xf32>,
    %c0_86 = arith.constant 0 : index
    %c8 = arith.constant 8 : index
    %c0_87 = arith.constant 0 : index
    %85 = vector.load %arg10[%c0_86, %c8, %c0_87] : memref<4x16x128xf32, #tpu.memory_space<vmem>>, vector<4x1x128xf32>
    %86 = vector.shape_cast %85 : vector<4x1x128xf32> to vector<4x128xf32>
    %c0_88 = arith.constant 0 : index
    %c1024 = arith.constant 1024 : index
    %87 = vector.load %arg11[%c0_88, %c1024] : memref<4x2048xf32, #tpu.memory_space<vmem>>, vector<4x128xf32>
    tpu.vector_store %arg11[%c0_88, %c1024], %86 {strides = array<i32>} : memref<4x2048xf32, #tpu.memory_space<vmem>>, vector<4x128xf32>,
    %c0_89 = arith.constant 0 : index
    %c9 = arith.constant 9 : index
    %c0_90 = arith.constant 0 : index
    %88 = vector.load %arg10[%c0_89, %c9, %c0_90] : memref<4x16x128xf32, #tpu.memory_space<vmem>>, vector<4x1x128xf32>
    %89 = vector.shape_cast %88 : vector<4x1x128xf32> to vector<4x128xf32>
    %c0_91 = arith.constant 0 : index
    %c1152 = arith.constant 1152 : index
    %90 = vector.load %arg11[%c0_91, %c1152] : memref<4x2048xf32, #tpu.memory_space<vmem>>, vector<4x128xf32>
    tpu.vector_store %arg11[%c0_91, %c1152], %89 {strides = array<i32>} : memref<4x2048xf32, #tpu.memory_space<vmem>>, vector<4x128xf32>,
    %c0_92 = arith.constant 0 : index
    %c10 = arith.constant 10 : index
    %c0_93 = arith.constant 0 : index
    %91 = vector.load %arg10[%c0_92, %c10, %c0_93] : memref<4x16x128xf32, #tpu.memory_space<vmem>>, vector<4x1x128xf32>
    %92 = vector.shape_cast %91 : vector<4x1x128xf32> to vector<4x128xf32>
    %c0_94 = arith.constant 0 : index
    %c1280 = arith.constant 1280 : index
    %93 = vector.load %arg11[%c0_94, %c1280] : memref<4x2048xf32, #tpu.memory_space<vmem>>, vector<4x128xf32>
    tpu.vector_store %arg11[%c0_94, %c1280], %92 {strides = array<i32>} : memref<4x2048xf32, #tpu.memory_space<vmem>>, vector<4x128xf32>,
    %c0_95 = arith.constant 0 : index
    %c11 = arith.constant 11 : index
    %c0_96 = arith.constant 0 : index
    %94 = vector.load %arg10[%c0_95, %c11, %c0_96] : memref<4x16x128xf32, #tpu.memory_space<vmem>>, vector<4x1x128xf32>
    %95 = vector.shape_cast %94 : vector<4x1x128xf32> to vector<4x128xf32>
    %c0_97 = arith.constant 0 : index
    %c1408 = arith.constant 1408 : index
    %96 = vector.load %arg11[%c0_97, %c1408] : memref<4x2048xf32, #tpu.memory_space<vmem>>, vector<4x128xf32>
    tpu.vector_store %arg11[%c0_97, %c1408], %95 {strides = array<i32>} : memref<4x2048xf32, #tpu.memory_space<vmem>>, vector<4x128xf32>,
    %c0_98 = arith.constant 0 : index
    %c12 = arith.constant 12 : index
    %c0_99 = arith.constant 0 : index
    %97 = vector.load %arg10[%c0_98, %c12, %c0_99] : memref<4x16x128xf32, #tpu.memory_space<vmem>>, vector<4x1x128xf32>
    %98 = vector.shape_cast %97 : vector<4x1x128xf32> to vector<4x128xf32>
    %c0_100 = arith.constant 0 : index
    %c1536 = arith.constant 1536 : index
    %99 = vector.load %arg11[%c0_100, %c1536] : memref<4x2048xf32, #tpu.memory_space<vmem>>, vector<4x128xf32>
    tpu.vector_store %arg11[%c0_100, %c1536], %98 {strides = array<i32>} : memref<4x2048xf32, #tpu.memory_space<vmem>>, vector<4x128xf32>,
    %c0_101 = arith.constant 0 : index
    %c13 = arith.constant 13 : index
    %c0_102 = arith.constant 0 : index
    %100 = vector.load %arg10[%c0_101, %c13, %c0_102] : memref<4x16x128xf32, #tpu.memory_space<vmem>>, vector<4x1x128xf32>
    %101 = vector.shape_cast %100 : vector<4x1x128xf32> to vector<4x128xf32>
    %c0_103 = arith.constant 0 : index
    %c1664 = arith.constant 1664 : index
    %102 = vector.load %arg11[%c0_103, %c1664] : memref<4x2048xf32, #tpu.memory_space<vmem>>, vector<4x128xf32>
    tpu.vector_store %arg11[%c0_103, %c1664], %101 {strides = array<i32>} : memref<4x2048xf32, #tpu.memory_space<vmem>>, vector<4x128xf32>,
    %c0_104 = arith.constant 0 : index
    %c14 = arith.constant 14 : index
    %c0_105 = arith.constant 0 : index
    %103 = vector.load %arg10[%c0_104, %c14, %c0_105] : memref<4x16x128xf32, #tpu.memory_space<vmem>>, vector<4x1x128xf32>
    %104 = vector.shape_cast %103 : vector<4x1x128xf32> to vector<4x128xf32>
    %c0_106 = arith.constant 0 : index
    %c1792 = arith.constant 1792 : index
    %105 = vector.load %arg11[%c0_106, %c1792] : memref<4x2048xf32, #tpu.memory_space<vmem>>, vector<4x128xf32>
    tpu.vector_store %arg11[%c0_106, %c1792], %104 {strides = array<i32>} : memref<4x2048xf32, #tpu.memory_space<vmem>>, vector<4x128xf32>,
    %c0_107 = arith.constant 0 : index
    %c15 = arith.constant 15 : index
    %c0_108 = arith.constant 0 : index
    %106 = vector.load %arg10[%c0_107, %c15, %c0_108] : memref<4x16x128xf32, #tpu.memory_space<vmem>>, vector<4x1x128xf32>
    %107 = vector.shape_cast %106 : vector<4x1x128xf32> to vector<4x128xf32>
    %c0_109 = arith.constant 0 : index
    %c1920 = arith.constant 1920 : index
    %108 = vector.load %arg11[%c0_109, %c1920] : memref<4x2048xf32, #tpu.memory_space<vmem>>, vector<4x128xf32>
    tpu.vector_store %arg11[%c0_109, %c1920], %107 {strides = array<i32>} : memref<4x2048xf32, #tpu.memory_space<vmem>>, vector<4x128xf32>,
    %c0_110 = arith.constant 0 : index
    %c0_111 = arith.constant 0 : index
    %109 = vector.load %arg11[%c0_110, %c0_111] : memref<4x2048xf32, #tpu.memory_space<vmem>>, vector<4x2048xf32>
    %110 = arith.truncf %109 : vector<4x2048xf32> to vector<4x2048xbf16>
    %c0_112 = arith.constant 0 : index
    %c0_113 = arith.constant 0 : index
    %111 = vector.load %arg6[%c0_112, %c0_113] : memref<2048x128xbf16, #tpu.memory_space<vmem>>, vector<2048x128xbf16>
    %cst_114 = arith.constant dense<0.000000e+00> : vector<4x128xf32>
    %112 = tpu.matmul %110, %111, %cst_114 {dimension_numbers = #tpu.dot_dimension_numbers<[1], [0], [0], [1], [0, 0, 1, 1], [], []>} : vector<4x2048xbf16>, vector<2048x128xbf16>, vector<4x128xf32> -> vector<4x128xf32>
    %c0_115 = arith.constant 0 : index
    %c0_116 = arith.constant 0 : index
    %113 = vector.load %arg7[%c0_115, %c0_116] : memref<1x128xf32, #tpu.memory_space<vmem>>, vector<1x128xf32>
    %114 = vector.broadcast %113 : vector<1x128xf32> to vector<4x128xf32>
    %115 = arith.addf %112, %114 : vector<4x128xf32>
    %c0_117 = arith.constant 0 : index
    %c0_118 = arith.constant 0 : index
    %c0_119 = arith.constant 0 : index
    %116 = vector.load %arg8[%c0_117, %c0_118, %c0_119] : memref<1x4x128xf32, #tpu.memory_space<vmem>>, vector<1x4x128xf32>
    %117 = vector.shape_cast %116 : vector<1x4x128xf32> to vector<4x128xf32>
    %118 = vector.shape_cast %115 : vector<4x128xf32> to vector<1x4x128xf32>
    tpu.vector_store %arg8[%c0_117, %c0_118, %c0_119], %118 {strides = array<i32>} : memref<1x4x128xf32, #tpu.memory_space<vmem>>, vector<1x4x128xf32>,
    return
  }
  func.func @transform_0(%arg0: i32) -> (i32, i32, i32) {
    %c0_i32 = arith.constant 0 : i32
    %c0_i32_0 = arith.constant 0 : i32
    %c0_i32_1 = arith.constant 0 : i32
    return %arg0, %c0_i32, %c0_i32_0 : i32, i32, i32
  }
  func.func @transform_1(%arg0: i32) -> (i32, i32, i32) {
    %c0_i32 = arith.constant 0 : i32
    %c0_i32_0 = arith.constant 0 : i32
    %c0_i32_1 = arith.constant 0 : i32
    %c0_i32_2 = arith.constant 0 : i32
    return %c0_i32, %c0_i32_0, %c0_i32_1 : i32, i32, i32
  }
  func.func @transform_2(%arg0: i32) -> (i32, i32) {
    %c0_i32 = arith.constant 0 : i32
    %c0_i32_0 = arith.constant 0 : i32
    %c0_i32_1 = arith.constant 0 : i32
    return %c0_i32, %c0_i32_0 : i32, i32
  }
  func.func @transform_3(%arg0: i32) -> (i32, i32, i32) {
    %c0_i32 = arith.constant 0 : i32
    %c0_i32_0 = arith.constant 0 : i32
    %c0_i32_1 = arith.constant 0 : i32
    %c0_i32_2 = arith.constant 0 : i32
    return %c0_i32, %c0_i32_0, %c0_i32_1 : i32, i32, i32
  }
  func.func @transform_4(%arg0: i32) -> (i32, i32) {
    %c0_i32 = arith.constant 0 : i32
    %c0_i32_0 = arith.constant 0 : i32
    %c0_i32_1 = arith.constant 0 : i32
    return %c0_i32, %c0_i32_0 : i32, i32
  }
  func.func @transform_5(%arg0: i32) -> (i32, i32) {
    %c0_i32 = arith.constant 0 : i32
    %c0_i32_0 = arith.constant 0 : i32
    %c0_i32_1 = arith.constant 0 : i32
    return %c0_i32, %c0_i32_0 : i32, i32
  }
  func.func @transform_6(%arg0: i32) -> (i32, i32) {
    %c0_i32 = arith.constant 0 : i32
    %c0_i32_0 = arith.constant 0 : i32
    %c0_i32_1 = arith.constant 0 : i32
    return %c0_i32, %c0_i32_0 : i32, i32
  }
  func.func @transform_7(%arg0: i32) -> (i32, i32, i32) {
    %c0_i32 = arith.constant 0 : i32
    %c0_i32_0 = arith.constant 0 : i32
    %c0_i32_1 = arith.constant 0 : i32
    return %arg0, %c0_i32, %c0_i32_0 : i32, i32, i32
  }
}

</mosaic_0001>

<llo_original>
// kernel: encoder_2d_forward.1
$region0: #{encoder_2d_forward.1}
  #allocation0 [shape = 'u32[]', space=smem, size = 0x4, offset = 0x4, fixed_abs, tag = 'smem constant byte address 0x4 - core index']
  #allocation1 [shape = 'u32[72,128]{1,0:T(1,128)}', space=vmem, size = 0x9000, scoped, tag = 'internal scratch']
  #allocation2 [shape = 'f32[4,18,128]{2,1,0:T(8,128)}', space=vmem, size = 0xc000, scoped, tag = 'scratch operand']
  #allocation3 [shape = 'f32[4,16,128]{2,1,0:T(8,128)}', space=vmem, size = 0x8000, scoped, tag = 'scratch operand']
  #allocation4 [shape = 'f32[4,2048]{1,0:T(4,128)}', space=vmem, size = 0x8000, scoped, tag = 'scratch operand']
  %s0 = inlined_call_operand.vmem [shape: f32[8,18,128], index: 0, kind: input, shape index: {}]
  %s1 = inlined_call_operand.vmem [shape: bf16[3,128,128], index: 1, kind: input, shape index: {}]
  %s2 = inlined_call_operand.vmem [shape: f32[1,128], index: 2, kind: input, shape index: {}]
  %s3 = inlined_call_operand.vmem [shape: bf16[3,128,128], index: 3, kind: input, shape index: {}]
  %s4 = inlined_call_operand.vmem [shape: f32[1,128], index: 4, kind: input, shape index: {}]
  %s5 = inlined_call_operand.vmem [shape: bf16[2048,128], index: 5, kind: input, shape index: {}]
  %s6 = inlined_call_operand.vmem [shape: f32[1,128], index: 6, kind: input, shape index: {}]
  %s7 = inlined_call_operand.hbm [shape: f32[2,4,128], index: 7, kind: output, shape index: {}]
  %s8 = sld [smem:[#allocation0]]
  $region61: #{encoder_2d_forward.1} parent=0
    _
  %s10 = ssub.s32 1, %s8
  %s11 = scalar_select 0, %s10, %s8
  $region1: #{encoder_2d_forward.1} parent=0
    #allocation5 [shape = 'u8[4096]{0}', space=vmem, size = 0x1000, scoped, tag = 'output window, operand 0']
    #allocation6 [shape = 's32[2]{0}', space=sflag, size = 0x8, scoped, tag = 'scoped memory for encoder_2d_forward.1']
    %12 = vsyncpa [#allocation6], 0
    %s13 = scalar_lea.sflag [#allocation6], 1
    %14 = vsyncpa %s13, 0
    loop: start=0, step=1, limit=4
    $region2: #{encoder_2d_forward.1} parent=1 // loop_pre_header
      _
    $region3: #{encoder_2d_forward.1} parent=1 // loop_header
      %s16 = sphi 0, %s20
      %p17 = scmp.ge.s32.totalorder %s16, 4
      %s26 = sphi 0, %s28
      %s29 = sphi 0, %s26
      %s30 = sphi 0, %s29
      %s46 = sphi 0, %s30
      %s50 = sphi 0, %s50
      %s52 = sphi 0, %s50
      %s53 = sphi 0, %s52
      %s67 = sphi 0, %s53
      %s71 = sphi 0, %s71
      %s73 = sphi 0, %s71
      %s74 = sphi 0, %s73
      %s88 = sphi 0, %s74
      %s92 = sphi 0, %s92
      %s94 = sphi 0, %s92
      %s95 = sphi 0, %s94
      %s109 = sphi 0, %s95
      %s113 = sphi 0, %s113
      %s115 = sphi 0, %s113
      %s116 = sphi 0, %s115
      %s130 = sphi 0, %s116
      %s134 = sphi 0, %s134
      %s136 = sphi 0, %s134
      %s137 = sphi 0, %s136
      %s151 = sphi 0, %s137
      %s155 = sphi 0, %s155
      %s157 = sphi 0, %s155
      %s158 = sphi 0, %s157
      %s172 = sphi 0, %s158
      %s178 = sphi 0, %s180
      %s181 = sphi 0, %s178
      %s182 = sphi 0, %s181
      %s198 = sphi 0, %s182
    $region4: #{encoder_2d_forward.1} parent=1 // loop_header_branch
      %19 = sbr.rel (%p17) target = $region8
    $region5: #{encoder_2d_forward.1} parent=1 // loop_body
      %s21 = ssub.s32 %s16, 1
      %s22 = ssub.s32 %s16, 2
      %s23 = sadd.s32 %s16, 1
      %s24 = ssub.s32 %s16, %s23
      %p25 = scmp.eq.s32.totalorder %s24, 0
      %s27 = sadd.s32 %s26, 1
      %s28 = scalar_select %p25, %s26, %s27
      %p31 = pneg %p25
      %p32 = scmp.eq.s32.totalorder %s16, 1
      %p33 = por %p31, %p32
      %p34 = scmp.ne.s32.totalorder %s26, %s29
      %p35 = scmp.eq.s32.totalorder %s16, 0
      %p36 = por %p34, %p35
      %p37 = scmp.ne.s32.totalorder %s26, %s29
      %p38 = scmp.eq.s32.totalorder %s21, 1
      %p39 = por %p37, %p38
      %p40 = scmp.ne.s32.totalorder %s29, %s30
      %p41 = scmp.eq.s32.totalorder %s21, 0
      %p42 = por %p40, %p41
      %p43 = scmp.ne.s32.totalorder %s29, %s30
      %p44 = scmp.eq.s32.totalorder %s22, 1
      %p45 = por %p43, %p44
      %p47 = scmp.ne.s32.totalorder %s30, %s46
      %p48 = scmp.eq.s32.totalorder %s22, 0
      %p49 = por %p47, %p48
      %s51 = sadd.s32 %s50, 1
      %p54 = scmp.eq.s32.totalorder %s16, 1
      %p55 = scmp.ne.s32.totalorder %s50, %s52
      %p56 = scmp.eq.s32.totalorder %s16, 0
      %p57 = por %p55, %p56
      %p58 = scmp.ne.s32.totalorder %s50, %s52
      %p59 = scmp.eq.s32.totalorder %s21, 1
      %p60 = por %p58, %p59
      %p61 = scmp.ne.s32.totalorder %s52, %s53
      %p62 = scmp.eq.s32.totalorder %s21, 0
      %p63 = por %p61, %p62
      %p64 = scmp.ne.s32.totalorder %s52, %s53
      %p65 = scmp.eq.s32.totalorder %s22, 1
      %p66 = por %p64, %p65
      %p68 = scmp.ne.s32.totalorder %s53, %s67
      %p69 = scmp.eq.s32.totalorder %s22, 0
      %p70 = por %p68, %p69
      %s72 = sadd.s32 %s71, 1
      %p75 = scmp.eq.s32.totalorder %s16, 1
      %p76 = scmp.ne.s32.totalorder %s71, %s73
      %p77 = scmp.eq.s32.totalorder %s16, 0
      %p78 = por %p76, %p77
      %p79 = scmp.ne.s32.totalorder %s71, %s73
      %p80 = scmp.eq.s32.totalorder %s21, 1
      %p81 = por %p79, %p80
      %p82 = scmp.ne.s32.totalorder %s73, %s74
      %p83 = scmp.eq.s32.totalorder %s21, 0
      %p84 = por %p82, %p83
      %p85 = scmp.ne.s32.totalorder %s73, %s74
      %p86 = scmp.eq.s32.totalorder %s22, 1
      %p87 = por %p85, %p86
      %p89 = scmp.ne.s32.totalorder %s74, %s88
      %p90 = scmp.eq.s32.totalorder %s22, 0
      %p91 = por %p89, %p90
      %s93 = sadd.s32 %s92, 1
      %p96 = scmp.eq.s32.totalorder %s16, 1
      %p97 = scmp.ne.s32.totalorder %s92, %s94
      %p98 = scmp.eq.s32.totalorder %s16, 0
      %p99 = por %p97, %p98
      %p100 = scmp.ne.s32.totalorder %s92, %s94
      %p101 = scmp.eq.s32.totalorder %s21, 1
      %p102 = por %p100, %p101
      %p103 = scmp.ne.s32.totalorder %s94, %s95
      %p104 = scmp.eq.s32.totalorder %s21, 0
      %p105 = por %p103, %p104
      %p106 = scmp.ne.s32.totalorder %s94, %s95
      %p107 = scmp.eq.s32.totalorder %s22, 1
      %p108 = por %p106, %p107
      %p110 = scmp.ne.s32.totalorder %s95, %s109
      %p111 = scmp.eq.s32.totalorder %s22, 0
      %p112 = por %p110, %p111
      %s114 = sadd.s32 %s113, 1
      %p117 = scmp.eq.s32.totalorder %s16, 1
      %p118 = scmp.ne.s32.totalorder %s113, %s115
      %p119 = scmp.eq.s32.totalorder %s16, 0
      %p120 = por %p118, %p119
      %p121 = scmp.ne.s32.totalorder %s113, %s115
      %p122 = scmp.eq.s32.totalorder %s21, 1
      %p123 = por %p121, %p122
      %p124 = scmp.ne.s32.totalorder %s115, %s116
      %p125 = scmp.eq.s32.totalorder %s21, 0
      %p126 = por %p124, %p125
      %p127 = scmp.ne.s32.totalorder %s115, %s116
      %p128 = scmp.eq.s32.totalorder %s22, 1
      %p129 = por %p127, %p128
      %p131 = scmp.ne.s32.totalorder %s116, %s130
      %p132 = scmp.eq.s32.totalorder %s22, 0
      %p133 = por %p131, %p132
      %s135 = sadd.s32 %s134, 1
      %p138 = scmp.eq.s32.totalorder %s16, 1
      %p139 = scmp.ne.s32.totalorder %s134, %s136
      %p140 = scmp.eq.s32.totalorder %s16, 0
      %p141 = por %p139, %p140
      %p142 = scmp.ne.s32.totalorder %s134, %s136
      %p143 = scmp.eq.s32.totalorder %s21, 1
      %p144 = por %p142, %p143
      %p145 = scmp.ne.s32.totalorder %s136, %s137
      %p146 = scmp.eq.s32.totalorder %s21, 0
      %p147 = por %p145, %p146
      %p148 = scmp.ne.s32.totalorder %s136, %s137
      %p149 = scmp.eq.s32.totalorder %s22, 1
      %p150 = por %p148, %p149
      %p152 = scmp.ne.s32.totalorder %s137, %s151
      %p153 = scmp.eq.s32.totalorder %s22, 0
      %p154 = por %p152, %p153
      %s156 = sadd.s32 %s155, 1
      %p159 = scmp.eq.s32.totalorder %s16, 1
      %p160 = scmp.ne.s32.totalorder %s155, %s157
      %p161 = scmp.eq.s32.totalorder %s16, 0
      %p162 = por %p160, %p161
      %p163 = scmp.ne.s32.totalorder %s155, %s157
      %p164 = scmp.eq.s32.totalorder %s21, 1
      %p165 = por %p163, %p164
      %p166 = scmp.ne.s32.totalorder %s157, %s158
      %p167 = scmp.eq.s32.totalorder %s21, 0
      %p168 = por %p166, %p167
      %p169 = scmp.ne.s32.totalorder %s157, %s158
      %p170 = scmp.eq.s32.totalorder %s22, 1
      %p171 = por %p169, %p170
      %p173 = scmp.ne.s32.totalorder %s158, %s172
      %p174 = scmp.eq.s32.totalorder %s22, 0
      %p175 = por %p173, %p174
      %s176 = ssub.s32 %s16, %s23
      %p177 = scmp.eq.s32.totalorder %s176, 0
      %s179 = sadd.s32 %s178, 1
      %s180 = scalar_select %p177, %s178, %s179
      %p183 = pneg %p177
      %p184 = scmp.eq.s32.totalorder %s16, 1
      %p185 = por %p183, %p184
      %p186 = scmp.ne.s32.totalorder %s178, %s181
      %p187 = scmp.eq.s32.totalorder %s16, 0
      %p188 = por %p186, %p187
      %p189 = scmp.ne.s32.totalorder %s178, %s181
      %p190 = scmp.eq.s32.totalorder %s21, 1
      %p191 = por %p189, %p190
      %p192 = scmp.ne.s32.totalorder %s181, %s182
      %p193 = scmp.eq.s32.totalorder %s21, 0
      %p194 = por %p192, %p193
      %p195 = scmp.ne.s32.totalorder %s181, %s182
      %p196 = scmp.eq.s32.totalorder %s22, 1
      %p197 = por %p195, %p196
      %p199 = scmp.ne.s32.totalorder %s182, %s198
      %p200 = scmp.eq.s32.totalorder %s22, 0
      %p201 = por %p199, %p200
      %p202 = scmp.le.s32.totalorder 1, %s16
      %p203 = scmp.lt.s32.totalorder %s16, 3
      %p204 = pnand %p202, %p203
      %p205 = pneg %p204
      // Predicated region
      $region9: #{encoder_2d_forward.1} parent=5 // pred_check
        _
      $region10: #{encoder_2d_forward.1} parent=5 // pred_check_branch
        %207 = sbr.rel (%p204) target = $region12
      $region11: #{encoder_2d_forward.1} parent=5 // pred_region
        %s208 = ssub.s32 %s16, 1
        // Predicated region
        $region13: #{encoder_2d_forward.1} parent=11 // pred_check
          %p209 = pneg %p63
        $region14: #{encoder_2d_forward.1} parent=11 // pred_check_branch
          %211 = sbr.rel (%p209) target = $region16
        $region15: #{encoder_2d_forward.1} parent=11 // pred_region
          _
        $region16: #{encoder_2d_forward.1} parent=11 // pred_fallthru
          _
        // Predicated region
        $region17: #{encoder_2d_forward.1} parent=11 // pred_check
          %p212 = pneg %p84
        $region18: #{encoder_2d_forward.1} parent=11 // pred_check_branch
          %214 = sbr.rel (%p212) target = $region20
        $region19: #{encoder_2d_forward.1} parent=11 // pred_region
          _
        $region20: #{encoder_2d_forward.1} parent=11 // pred_fallthru
          _
        // Predicated region
        $region21: #{encoder_2d_forward.1} parent=11 // pred_check
          %p215 = pneg %p105
        $region22: #{encoder_2d_forward.1} parent=11 // pred_check_branch
          %217 = sbr.rel (%p215) target = $region24
        $region23: #{encoder_2d_forward.1} parent=11 // pred_region
          _
        $region24: #{encoder_2d_forward.1} parent=11 // pred_fallthru
          _
        // Predicated region
        $region25: #{encoder_2d_forward.1} parent=11 // pred_check
          %p218 = pneg %p126
        $region26: #{encoder_2d_forward.1} parent=11 // pred_check_branch
          %220 = sbr.rel (%p218) target = $region28
        $region27: #{encoder_2d_forward.1} parent=11 // pred_region
          _
        $region28: #{encoder_2d_forward.1} parent=11 // pred_fallthru
          _
        // Predicated region
        $region29: #{encoder_2d_forward.1} parent=11 // pred_check
          %p221 = pneg %p147
        $region30: #{encoder_2d_forward.1} parent=11 // pred_check_branch
          %223 = sbr.rel (%p221) target = $region32
        $region31: #{encoder_2d_forward.1} parent=11 // pred_region
          _
        $region32: #{encoder_2d_forward.1} parent=11 // pred_fallthru
          _
        // Predicated region
        $region33: #{encoder_2d_forward.1} parent=11 // pred_check
          %p224 = pneg %p168
        $region34: #{encoder_2d_forward.1} parent=11 // pred_check_branch
          %226 = sbr.rel (%p224) target = $region36
        $region35: #{encoder_2d_forward.1} parent=11 // pred_region
          _
        $region36: #{encoder_2d_forward.1} parent=11 // pred_fallthru
          _
      $region12: #{encoder_2d_forward.1} parent=5 // pred_fallthru
        _
      %p227 = scmp.lt.s32.totalorder %s16, 2
      // Predicated region
      $region37: #{encoder_2d_forward.1} parent=5 // pred_check
        %p228 = pneg %p227
      $region38: #{encoder_2d_forward.1} parent=5 // pred_check_branch
        %230 = sbr.rel (%p228) target = $region40
      $region39: #{encoder_2d_forward.1} parent=5 // pred_region
        // Predicated region
        $region41: #{encoder_2d_forward.1} parent=39 // pred_check
          %p231 = pneg %p36
        $region42: #{encoder_2d_forward.1} parent=39 // pred_check_branch
          %233 = sbr.rel (%p231) target = $region44
        $region43: #{encoder_2d_forward.1} parent=39 // pred_region
          %s234 = smul.u32 4, %s16
          %p235 = scmp.lt.s32.totalorder %s234, 7
          %s236 = scalar_select %p235, %s234, 7
          %s237 = smul.addr %s236, 3
          %s238 = smul.addr %s237, 8
          %s239 = scalar_lea.vmem %s0, %s238
          %s240 = smul.u32 4, %s16
        $region44: #{encoder_2d_forward.1} parent=39 // pred_fallthru
          _
      $region40: #{encoder_2d_forward.1} parent=5 // pred_fallthru
        _
      %p241 = scmp.le.s32.totalorder 1, %s16
      %p242 = scmp.lt.s32.totalorder %s16, 3
      %p243 = pnand %p241, %p242
      %p244 = pneg %p243
      // Predicated region
      $region45: #{encoder_2d_forward.1} parent=5 // pred_check
        _
      $region46: #{encoder_2d_forward.1} parent=5 // pred_check_branch
        %246 = sbr.rel (%p243) target = $region48
      $region47: #{encoder_2d_forward.1} parent=5 // pred_region
        %s247 = ssub.s32 %s16, 1
        %s248 = smul.u32 4, %s21
        %p249 = scmp.lt.s32.totalorder %s248, 7
        %s250 = scalar_select %p249, %s248, 7
        %s251 = smul.addr %s250, 3
        %s252 = smul.addr %s251, 8
        %s253 = scalar_lea.vmem %s0, %s252
        %p254 = pneg %p42
        %p255 = pneg %p39
        %p256 = pneg %p63
        %p257 = pneg %p60
        %p258 = pneg %p84
        %p259 = pneg %p81
        %p260 = pneg %p105
        %p261 = pneg %p102
        %p262 = pneg %p126
        %p263 = pneg %p123
        %p264 = pneg %p147
        %p265 = pneg %p144
        %p266 = pneg %p168
        %p267 = pneg %p165
        %p268 = pneg %p194
        %p269 = pneg %p191
        %s270 = sand.u32 %s181, 1
        %s271 = scalar_lea.sflag [#allocation6], %s270
        %s272 = sand.u32 %s181, 1
        %s273 = smul.addr %s272, 4
        %s274 = scalar_lea.vmem [#allocation5], %s273
        %s275 = smul.u32 4, %s21
        %p276 = scmp.lt.s32.totalorder %s275, 7
        %s277 = scalar_select %p276, %s275, 7
        %s278 = smul.addr %s277, 3
        %s279 = smul.addr %s278, 8
        %s280 = scalar_lea.vmem %s0, %s279
        %s281 = smul.u32 4, %s21
        %v282 = vld [vmem:[%s280] sm:$0xff]
        %v283 = vld [vmem:[%s280 + $0x8] sm:$0xff]
        %v284 = vld [vmem:[%s280 + $0x18] sm:$0xff]
        %v285 = vld [vmem:[%s280 + $0x20] sm:$0xff]
        %v286 = vld [vmem:[%s280 + $0x30] sm:$0xff]
        %v287 = vld [vmem:[%s280 + $0x38] sm:$0xff]
        %v288 = vld [vmem:[%s280 + $0x48] sm:$0xff]
        %v289 = vld [vmem:[%s280 + $0x50] sm:$0xff]
        %v290 = vpack.c.bf16 %v283, %v282
        %v291 = vpack.c.bf16 %v285, %v284
        %v292 = vpack.c.bf16 %v287, %v286
        %v293 = vpack.c.bf16 %v289, %v288
        %v294 = vld [vmem:[%s1] sm:$0xf]
        %v295 = vld [vmem:[%s1 + $0x4] sm:$0xf]
        %v296 = vld [vmem:[%s1 + $0x8] sm:$0xf]
        %v297 = vld [vmem:[%s1 + $0xc] sm:$0xf]
        %v298 = vld [vmem:[%s1 + $0x10] sm:$0xf]
        %v299 = vld [vmem:[%s1 + $0x14] sm:$0xf]
        %v300 = vld [vmem:[%s1 + $0x18] sm:$0xf]
        %v301 = vld [vmem:[%s1 + $0x1c] sm:$0xf]
        %v302 = vld [vmem:[%s1 + $0x20] sm:$0xf]
        %v303 = vld [vmem:[%s1 + $0x24] sm:$0xf]
        %v304 = vld [vmem:[%s1 + $0x28] sm:$0xf]
        %v305 = vld [vmem:[%s1 + $0x2c] sm:$0xf]
        %v306 = vld [vmem:[%s1 + $0x30] sm:$0xf]
        %v307 = vld [vmem:[%s1 + $0x34] sm:$0xf]
        %v308 = vld [vmem:[%s1 + $0x38] sm:$0xf]
        %v309 = vld [vmem:[%s1 + $0x3c] sm:$0xf]
        %v310 = vld [vmem:[%s280 + $0x1] sm:$0xff]
        %v311 = vld [vmem:[%s280 + $0x9] sm:$0xff]
        %v312 = vld [vmem:[%s280 + $0x19] sm:$0xff]
        %v313 = vld [vmem:[%s280 + $0x21] sm:$0xff]
        %v314 = vld [vmem:[%s280 + $0x31] sm:$0xff]
        %v315 = vld [vmem:[%s280 + $0x39] sm:$0xff]
        %v316 = vld [vmem:[%s280 + $0x49] sm:$0xff]
        %v317 = vld [vmem:[%s280 + $0x51] sm:$0xff]
        %v318 = vpack.c.bf16 %v311, %v310
        %v319 = vpack.c.bf16 %v313, %v312
        %v320 = vpack.c.bf16 %v315, %v314
        %v321 = vpack.c.bf16 %v317, %v316
        %s322 = scalar_lea.vmem %s1, 64
        %v323 = vld [vmem:[%s322] sm:$0xf]
        %v324 = vld [vmem:[%s322 + $0x4] sm:$0xf]
        %v325 = vld [vmem:[%s322 + $0x8] sm:$0xf]
        %v326 = vld [vmem:[%s322 + $0xc] sm:$0xf]
        %v327 = vld [vmem:[%s322 + $0x10] sm:$0xf]
        %v328 = vld [vmem:[%s322 + $0x14] sm:$0xf]
        %v329 = vld [vmem:[%s322 + $0x18] sm:$0xf]
        %v330 = vld [vmem:[%s322 + $0x1c] sm:$0xf]
        %v331 = vld [vmem:[%s322 + $0x20] sm:$0xf]
        %v332 = vld [vmem:[%s322 + $0x24] sm:$0xf]
        %v333 = vld [vmem:[%s322 + $0x28] sm:$0xf]
        %v334 = vld [vmem:[%s322 + $0x2c] sm:$0xf]
        %v335 = vld [vmem:[%s322 + $0x30] sm:$0xf]
        %v336 = vld [vmem:[%s322 + $0x34] sm:$0xf]
        %v337 = vld [vmem:[%s322 + $0x38] sm:$0xf]
        %v338 = vld [vmem:[%s322 + $0x3c] sm:$0xf]
        %v355 = vunpack.c.l.b16 %v323
        %v356 = vunpack.c.l.b16 %v324
        %v357 = vunpack.c.l.b16 %v325
        %v358 = vunpack.c.l.b16 %v326
        %v359 = vunpack.c.l.b16 %v327
        %v360 = vunpack.c.l.b16 %v328
        %v361 = vunpack.c.l.b16 %v329
        %v362 = vunpack.c.l.b16 %v330
        %v363 = vunpack.c.l.b16 %v331
        %v364 = vunpack.c.l.b16 %v332
        %v365 = vunpack.c.l.b16 %v333
        %v366 = vunpack.c.l.b16 %v334
        %v367 = vunpack.c.l.b16 %v335
        %v368 = vunpack.c.l.b16 %v336
        %v369 = vunpack.c.l.b16 %v337
        %v370 = vunpack.c.l.b16 %v338
        %v371 = vpack.c.b16 %v356, %v355
        %v372 = vpack.c.b16 %v358, %v357
        %v373 = vpack.c.b16 %v360, %v359
        %v374 = vpack.c.b16 %v362, %v361
        %v375 = vpack.c.b16 %v364, %v363
        %v376 = vpack.c.b16 %v366, %v365
        %v377 = vpack.c.b16 %v368, %v367
        %v378 = vpack.c.b16 %v370, %v369
        %387 = vmatpush.bf16.msra.mxu0 %v378
        %388 = vmatpush.bf16.msra.mxu0 %v377
        %389 = vmatpush.bf16.msra.mxu0 %v376
        %390 = vmatpush.bf16.msra.mxu0 %v375
        %391 = vmatpush.bf16.msra.mxu0 %v374
        %392 = vmatpush.bf16.msra.mxu0 %v373
        %393 = vmatpush.bf16.msra.mxu0 %v372
        %394 = vmatpush.bf16.msra.mxu0 %v371
        %395 = vmatmul.bf16.gmra.mxu0 %v318
        %v396 = vpop.f32.mrf.mxu0
        %v397 = vadd.f32 0.0, %v396
        %v398 = vpop.f32.mrf.mxu0
        %v399 = vadd.f32 0.0, %v398
        %400 = vmatmul.bf16.gmra.mxu0 %v319
        %v401 = vpop.f32.mrf.mxu0
        %v402 = vadd.f32 0.0, %v401
        %v403 = vpop.f32.mrf.mxu0
        %v404 = vadd.f32 0.0, %v403
        %405 = vmatmul.bf16.gmra.mxu0 %v320
        %v406 = vpop.f32.mrf.mxu0
        %v407 = vadd.f32 0.0, %v406
        %v408 = vpop.f32.mrf.mxu0
        %v409 = vadd.f32 0.0, %v408
        %410 = vmatmul.bf16.gmra.mxu0 %v321
        %v411 = vpop.f32.mrf.mxu0
        %v412 = vadd.f32 0.0, %v411
        %v413 = vpop.f32.mrf.mxu0
        %v414 = vadd.f32 0.0, %v413
        %415 = vdwg.mxu0
        %v432 = vunpack.c.l.b16 %v294
        %v433 = vunpack.c.l.b16 %v295
        %v434 = vunpack.c.l.b16 %v296
        %v435 = vunpack.c.l.b16 %v297
        %v436 = vunpack.c.l.b16 %v298
        %v437 = vunpack.c.l.b16 %v299
        %v438 = vunpack.c.l.b16 %v300
        %v439 = vunpack.c.l.b16 %v301
        %v440 = vunpack.c.l.b16 %v302
        %v441 = vunpack.c.l.b16 %v303
        %v442 = vunpack.c.l.b16 %v304
        %v443 = vunpack.c.l.b16 %v305
        %v444 = vunpack.c.l.b16 %v306
        %v445 = vunpack.c.l.b16 %v307
        %v446 = vunpack.c.l.b16 %v308
        %v447 = vunpack.c.l.b16 %v309
        %v448 = vpack.c.b16 %v433, %v432
        %v449 = vpack.c.b16 %v435, %v434
        %v450 = vpack.c.b16 %v437, %v436
        %v451 = vpack.c.b16 %v439, %v438
        %v452 = vpack.c.b16 %v441, %v440
        %v453 = vpack.c.b16 %v443, %v442
        %v454 = vpack.c.b16 %v445, %v444
        %v455 = vpack.c.b16 %v447, %v446
        %464 = vmatpush.bf16.msra.mxu0 %v455
        %465 = vmatpush.bf16.msra.mxu0 %v454
        %466 = vmatpush.bf16.msra.mxu0 %v453
        %467 = vmatpush.bf16.msra.mxu0 %v452
        %468 = vmatpush.bf16.msra.mxu0 %v451
        %469 = vmatpush.bf16.msra.mxu0 %v450
        %470 = vmatpush.bf16.msra.mxu0 %v449
        %471 = vmatpush.bf16.msra.mxu0 %v448
        %472 = vmatmul.bf16.gmra.mxu0 %v290
        %v473 = vpop.f32.mrf.mxu0
        %v474 = vadd.f32 %v397, %v473
        %v475 = vpop.f32.mrf.mxu0
        %v476 = vadd.f32 %v399, %v475
        %477 = vmatmul.bf16.gmra.mxu0 %v291
        %v478 = vpop.f32.mrf.mxu0
        %v479 = vadd.f32 %v402, %v478
        %v480 = vpop.f32.mrf.mxu0
        %v481 = vadd.f32 %v404, %v480
        %482 = vmatmul.bf16.gmra.mxu0 %v292
        %v483 = vpop.f32.mrf.mxu0
        %v484 = vadd.f32 %v407, %v483
        %v485 = vpop.f32.mrf.mxu0
        %v486 = vadd.f32 %v409, %v485
        %487 = vmatmul.bf16.gmra.mxu0 %v293
        %v488 = vpop.f32.mrf.mxu0
        %v489 = vadd.f32 %v412, %v488
        %v490 = vpop.f32.mrf.mxu0
        %v491 = vadd.f32 %v414, %v490
        %492 = vdwg.mxu0
        %v493 = vld [vmem:[%s280 + $0x2] sm:$0xff]
        %v494 = vld [vmem:[%s280 + $0xa] sm:$0xff]
        %v495 = vld [vmem:[%s280 + $0x1a] sm:$0xff]
        %v496 = vld [vmem:[%s280 + $0x22] sm:$0xff]
        %v497 = vld [vmem:[%s280 + $0x32] sm:$0xff]
        %v498 = vld [vmem:[%s280 + $0x3a] sm:$0xff]
        %v499 = vld [vmem:[%s280 + $0x4a] sm:$0xff]
        %v500 = vld [vmem:[%s280 + $0x52] sm:$0xff]
        %v501 = vpack.c.bf16 %v494, %v493
        %v502 = vpack.c.bf16 %v496, %v495
        %v503 = vpack.c.bf16 %v498, %v497
        %v504 = vpack.c.bf16 %v500, %v499
        %s505 = scalar_lea.vmem %s1, 128
        %v506 = vld [vmem:[%s505] sm:$0xf]
        %v507 = vld [vmem:[%s505 + $0x4] sm:$0xf]
        %v508 = vld [vmem:[%s505 + $0x8] sm:$0xf]
        %v509 = vld [vmem:[%s505 + $0xc] sm:$0xf]
        %v510 = vld [vmem:[%s505 + $0x10] sm:$0xf]
        %v511 = vld [vmem:[%s505 + $0x14] sm:$0xf]
        %v512 = vld [vmem:[%s505 + $0x18] sm:$0xf]
        %v513 = vld [vmem:[%s505 + $0x1c] sm:$0xf]
        %v514 = vld [vmem:[%s505 + $0x20] sm:$0xf]
        %v515 = vld [vmem:[%s505 + $0x24] sm:$0xf]
        %v516 = vld [vmem:[%s505 + $0x28] sm:$0xf]
        %v517 = vld [vmem:[%s505 + $0x2c] sm:$0xf]
        %v518 = vld [vmem:[%s505 + $0x30] sm:$0xf]
        %v519 = vld [vmem:[%s505 + $0x34] sm:$0xf]
        %v520 = vld [vmem:[%s505 + $0x38] sm:$0xf]
        %v521 = vld [vmem:[%s505 + $0x3c] sm:$0xf]
        %v538 = vunpack.c.l.b16 %v506
        %v539 = vunpack.c.l.b16 %v507
        %v540 = vunpack.c.l.b16 %v508
        %v541 = vunpack.c.l.b16 %v509
        %v542 = vunpack.c.l.b16 %v510
        %v543 = vunpack.c.l.b16 %v511
        %v544 = vunpack.c.l.b16 %v512
        %v545 = vunpack.c.l.b16 %v513
        %v546 = vunpack.c.l.b16 %v514
        %v547 = vunpack.c.l.b16 %v515
        %v548 = vunpack.c.l.b16 %v516
        %v549 = vunpack.c.l.b16 %v517
        %v550 = vunpack.c.l.b16 %v518
        %v551 = vunpack.c.l.b16 %v519
        %v552 = vunpack.c.l.b16 %v520
        %v553 = vunpack.c.l.b16 %v521
        %v554 = vpack.c.b16 %v539, %v538
        %v555 = vpack.c.b16 %v541, %v540
        %v556 = vpack.c.b16 %v543, %v542
        %v557 = vpack.c.b16 %v545, %v544
        %v558 = vpack.c.b16 %v547, %v546
        %v559 = vpack.c.b16 %v549, %v548
        %v560 = vpack.c.b16 %v551, %v550
        %v561 = vpack.c.b16 %v553, %v552
        %570 = vmatpush.bf16.msra.mxu0 %v561
        %571 = vmatpush.bf16.msra.mxu0 %v560
        %572 = vmatpush.bf16.msra.mxu0 %v559
        %573 = vmatpush.bf16.msra.mxu0 %v558
        %574 = vmatpush.bf16.msra.mxu0 %v557
        %575 = vmatpush.bf16.msra.mxu0 %v556
        %576 = vmatpush.bf16.msra.mxu0 %v555
        %577 = vmatpush.bf16.msra.mxu0 %v554
        %578 = vmatmul.bf16.gmra.mxu0 %v501
        %v579 = vpop.f32.mrf.mxu0
        %v580 = vadd.f32 0.0, %v579
        %v581 = vpop.f32.mrf.mxu0
        %v582 = vadd.f32 0.0, %v581
        %583 = vmatmul.bf16.gmra.mxu0 %v502
        %v584 = vpop.f32.mrf.mxu0
        %v585 = vadd.f32 0.0, %v584
        %v586 = vpop.f32.mrf.mxu0
        %v587 = vadd.f32 0.0, %v586
        %588 = vmatmul.bf16.gmra.mxu0 %v503
        %v589 = vpop.f32.mrf.mxu0
        %v590 = vadd.f32 0.0, %v589
        %v591 = vpop.f32.mrf.mxu0
        %v592 = vadd.f32 0.0, %v591
        %593 = vmatmul.bf16.gmra.mxu0 %v504
        %v594 = vpop.f32.mrf.mxu0
        %v595 = vadd.f32 0.0, %v594
        %v596 = vpop.f32.mrf.mxu0
        %v597 = vadd.f32 0.0, %v596
        %598 = vdwg.mxu0
        %v599 = vadd.f32 %v474, %v580
        %v600 = vadd.f32 %v476, %v582
        %v601 = vadd.f32 %v479, %v585
        %v602 = vadd.f32 %v481, %v587
        %v603 = vadd.f32 %v484, %v590
        %v604 = vadd.f32 %v486, %v592
        %v605 = vadd.f32 %v489, %v595
        %v606 = vadd.f32 %v491, %v597
        %v607 = vld [vmem:[%s2] sm:$0x1]
        %v609 = vperm.slane %v607, 0
        %v611 = vadd.f32 %v599, %v609
        %v612 = vadd.f32 %v600, %v609
        %v613 = vadd.f32 %v601, %v609
        %v614 = vadd.f32 %v602, %v609
        %v615 = vadd.f32 %v603, %v609
        %v616 = vadd.f32 %v604, %v609
        %v617 = vadd.f32 %v605, %v609
        %v618 = vadd.f32 %v606, %v609
        %v619 = vmax.f32 %v611, 0.0
        %v620 = vmax.f32 %v612, 0.0
        %v621 = vmax.f32 %v613, 0.0
        %v622 = vmax.f32 %v614, 0.0
        %v623 = vmax.f32 %v615, 0.0
        %v624 = vmax.f32 %v616, 0.0
        %v625 = vmax.f32 %v617, 0.0
        %v626 = vmax.f32 %v618, 0.0
        %627 = vst [vmem:[#allocation2] sm:$0x1] 0.0
        %628 = vst [vmem:[#allocation2 + $0x18] sm:$0x1] 0.0
        %629 = vst [vmem:[#allocation2 + $0x30] sm:$0x1] 0.0
        %630 = vst [vmem:[#allocation2 + $0x48] sm:$0x1] 0.0
        %631 = vst [vmem:[#allocation2 + $0x11] sm:$0x1] 0.0
        %632 = vst [vmem:[#allocation2 + $0x29] sm:$0x1] 0.0
        %633 = vst [vmem:[#allocation2 + $0x41] sm:$0x1] 0.0
        %634 = vst [vmem:[#allocation2 + $0x59] sm:$0x1] 0.0
        %635 = vst [vmem:[#allocation2 + $0x1] sm:$0xff] %v619
        %636 = vst [vmem:[#allocation2 + $0x9] sm:$0xff] %v620
        %637 = vst [vmem:[#allocation2 + $0x19] sm:$0xff] %v621
        %638 = vst [vmem:[#allocation2 + $0x21] sm:$0xff] %v622
        %639 = vst [vmem:[#allocation2 + $0x31] sm:$0xff] %v623
        %640 = vst [vmem:[#allocation2 + $0x39] sm:$0xff] %v624
        %641 = vst [vmem:[#allocation2 + $0x49] sm:$0xff] %v625
        %642 = vst [vmem:[#allocation2 + $0x51] sm:$0xff] %v626
        %v643 = vld [vmem:[#allocation2] sm:$0xff]
        %v644 = vld [vmem:[#allocation2 + $0x8] sm:$0xff]
        %v645 = vld [vmem:[#allocation2 + $0x18] sm:$0xff]
        %v646 = vld [vmem:[#allocation2 + $0x20] sm:$0xff]
        %v647 = vld [vmem:[#allocation2 + $0x30] sm:$0xff]
        %v648 = vld [vmem:[#allocation2 + $0x38] sm:$0xff]
        %v649 = vld [vmem:[#allocation2 + $0x48] sm:$0xff]
        %v650 = vld [vmem:[#allocation2 + $0x50] sm:$0xff]
        %v651 = vpack.c.bf16 %v644, %v643
        %v652 = vpack.c.bf16 %v646, %v645
        %v653 = vpack.c.bf16 %v648, %v647
        %v654 = vpack.c.bf16 %v650, %v649
        %v655 = vld [vmem:[%s3] sm:$0xf]
        %v656 = vld [vmem:[%s3 + $0x4] sm:$0xf]
        %v657 = vld [vmem:[%s3 + $0x8] sm:$0xf]
        %v658 = vld [vmem:[%s3 + $0xc] sm:$0xf]
        %v659 = vld [vmem:[%s3 + $0x10] sm:$0xf]
        %v660 = vld [vmem:[%s3 + $0x14] sm:$0xf]
        %v661 = vld [vmem:[%s3 + $0x18] sm:$0xf]
        %v662 = vld [vmem:[%s3 + $0x1c] sm:$0xf]
        %v663 = vld [vmem:[%s3 + $0x20] sm:$0xf]
        %v664 = vld [vmem:[%s3 + $0x24] sm:$0xf]
        %v665 = vld [vmem:[%s3 + $0x28] sm:$0xf]
        %v666 = vld [vmem:[%s3 + $0x2c] sm:$0xf]
        %v667 = vld [vmem:[%s3 + $0x30] sm:$0xf]
        %v668 = vld [vmem:[%s3 + $0x34] sm:$0xf]
        %v669 = vld [vmem:[%s3 + $0x38] sm:$0xf]
        %v670 = vld [vmem:[%s3 + $0x3c] sm:$0xf]
        %v671 = vld [vmem:[#allocation2 + $0x1] sm:$0xff]
        %v672 = vld [vmem:[#allocation2 + $0x9] sm:$0xff]
        %v673 = vld [vmem:[#allocation2 + $0x19] sm:$0xff]
        %v674 = vld [vmem:[#allocation2 + $0x21] sm:$0xff]
        %v675 = vld [vmem:[#allocation2 + $0x31] sm:$0xff]
        %v676 = vld [vmem:[#allocation2 + $0x39] sm:$0xff]
        %v677 = vld [vmem:[#allocation2 + $0x49] sm:$0xff]
        %v678 = vld [vmem:[#allocation2 + $0x51] sm:$0xff]
        %v679 = vpack.c.bf16 %v672, %v671
        %v680 = vpack.c.bf16 %v674, %v673
        %v681 = vpack.c.bf16 %v676, %v675
        %v682 = vpack.c.bf16 %v678, %v677
        %s683 = scalar_lea.vmem %s3, 64
        %v684 = vld [vmem:[%s683] sm:$0xf]
        %v685 = vld [vmem:[%s683 + $0x4] sm:$0xf]
        %v686 = vld [vmem:[%s683 + $0x8] sm:$0xf]
        %v687 = vld [vmem:[%s683 + $0xc] sm:$0xf]
        %v688 = vld [vmem:[%s683 + $0x10] sm:$0xf]
        %v689 = vld [vmem:[%s683 + $0x14] sm:$0xf]
        %v690 = vld [vmem:[%s683 + $0x18] sm:$0xf]
        %v691 = vld [vmem:[%s683 + $0x1c] sm:$0xf]
        %v692 = vld [vmem:[%s683 + $0x20] sm:$0xf]
        %v693 = vld [vmem:[%s683 + $0x24] sm:$0xf]
        %v694 = vld [vmem:[%s683 + $0x28] sm:$0xf]
        %v695 = vld [vmem:[%s683 + $0x2c] sm:$0xf]
        %v696 = vld [vmem:[%s683 + $0x30] sm:$0xf]
        %v697 = vld [vmem:[%s683 + $0x34] sm:$0xf]
        %v698 = vld [vmem:[%s683 + $0x38] sm:$0xf]
        %v699 = vld [vmem:[%s683 + $0x3c] sm:$0xf]
        %v716 = vunpack.c.l.b16 %v684
        %v717 = vunpack.c.l.b16 %v685
        %v718 = vunpack.c.l.b16 %v686
        %v719 = vunpack.c.l.b16 %v687
        %v720 = vunpack.c.l.b16 %v688
        %v721 = vunpack.c.l.b16 %v689
        %v722 = vunpack.c.l.b16 %v690
        %v723 = vunpack.c.l.b16 %v691
        %v724 = vunpack.c.l.b16 %v692
        %v725 = vunpack.c.l.b16 %v693
        %v726 = vunpack.c.l.b16 %v694
        %v727 = vunpack.c.l.b16 %v695
        %v728 = vunpack.c.l.b16 %v696
        %v729 = vunpack.c.l.b16 %v697
        %v730 = vunpack.c.l.b16 %v698
        %v731 = vunpack.c.l.b16 %v699
        %v732 = vpack.c.b16 %v717, %v716
        %v733 = vpack.c.b16 %v719, %v718
        %v734 = vpack.c.b16 %v721, %v720
        %v735 = vpack.c.b16 %v723, %v722
        %v736 = vpack.c.b16 %v725, %v724
        %v737 = vpack.c.b16 %v727, %v726
        %v738 = vpack.c.b16 %v729, %v728
        %v739 = vpack.c.b16 %v731, %v730
        %748 = vmatpush.bf16.msra.mxu0 %v739
        %749 = vmatpush.bf16.msra.mxu0 %v738
        %750 = vmatpush.bf16.msra.mxu0 %v737
        %751 = vmatpush.bf16.msra.mxu0 %v736
        %752 = vmatpush.bf16.msra.mxu0 %v735
        %753 = vmatpush.bf16.msra.mxu0 %v734
        %754 = vmatpush.bf16.msra.mxu0 %v733
        %755 = vmatpush.bf16.msra.mxu0 %v732
        %756 = vmatmul.bf16.gmra.mxu0 %v679
        %v757 = vpop.f32.mrf.mxu0
        %v758 = vadd.f32 0.0, %v757
        %v759 = vpop.f32.mrf.mxu0
        %v760 = vadd.f32 0.0, %v759
        %761 = vmatmul.bf16.gmra.mxu0 %v680
        %v762 = vpop.f32.mrf.mxu0
        %v763 = vadd.f32 0.0, %v762
        %v764 = vpop.f32.mrf.mxu0
        %v765 = vadd.f32 0.0, %v764
        %766 = vmatmul.bf16.gmra.mxu0 %v681
        %v767 = vpop.f32.mrf.mxu0
        %v768 = vadd.f32 0.0, %v767
        %v769 = vpop.f32.mrf.mxu0
        %v770 = vadd.f32 0.0, %v769
        %771 = vmatmul.bf16.gmra.mxu0 %v682
        %v772 = vpop.f32.mrf.mxu0
        %v773 = vadd.f32 0.0, %v772
        %v774 = vpop.f32.mrf.mxu0
        %v775 = vadd.f32 0.0, %v774
        %776 = vdwg.mxu0
        %v793 = vunpack.c.l.b16 %v655
        %v794 = vunpack.c.l.b16 %v656
        %v795 = vunpack.c.l.b16 %v657
        %v796 = vunpack.c.l.b16 %v658
        %v797 = vunpack.c.l.b16 %v659
        %v798 = vunpack.c.l.b16 %v660
        %v799 = vunpack.c.l.b16 %v661
        %v800 = vunpack.c.l.b16 %v662
        %v801 = vunpack.c.l.b16 %v663
        %v802 = vunpack.c.l.b16 %v664
        %v803 = vunpack.c.l.b16 %v665
        %v804 = vunpack.c.l.b16 %v666
        %v805 = vunpack.c.l.b16 %v667
        %v806 = vunpack.c.l.b16 %v668
        %v807 = vunpack.c.l.b16 %v669
        %v808 = vunpack.c.l.b16 %v670
        %v809 = vpack.c.b16 %v794, %v793
        %v810 = vpack.c.b16 %v796, %v795
        %v811 = vpack.c.b16 %v798, %v797
        %v812 = vpack.c.b16 %v800, %v799
        %v813 = vpack.c.b16 %v802, %v801
        %v814 = vpack.c.b16 %v804, %v803
        %v815 = vpack.c.b16 %v806, %v805
        %v816 = vpack.c.b16 %v808, %v807
        %825 = vmatpush.bf16.msra.mxu0 %v816
        %826 = vmatpush.bf16.msra.mxu0 %v815
        %827 = vmatpush.bf16.msra.mxu0 %v814
        %828 = vmatpush.bf16.msra.mxu0 %v813
        %829 = vmatpush.bf16.msra.mxu0 %v812
        %830 = vmatpush.bf16.msra.mxu0 %v811
        %831 = vmatpush.bf16.msra.mxu0 %v810
        %832 = vmatpush.bf16.msra.mxu0 %v809
        %833 = vmatmul.bf16.gmra.mxu0 %v651
        %v834 = vpop.f32.mrf.mxu0
        %v835 = vadd.f32 %v758, %v834
        %v836 = vpop.f32.mrf.mxu0
        %v837 = vadd.f32 %v760, %v836
        %838 = vmatmul.bf16.gmra.mxu0 %v652
        %v839 = vpop.f32.mrf.mxu0
        %v840 = vadd.f32 %v763, %v839
        %v841 = vpop.f32.mrf.mxu0
        %v842 = vadd.f32 %v765, %v841
        %843 = vmatmul.bf16.gmra.mxu0 %v653
        %v844 = vpop.f32.mrf.mxu0
        %v845 = vadd.f32 %v768, %v844
        %v846 = vpop.f32.mrf.mxu0
        %v847 = vadd.f32 %v770, %v846
        %848 = vmatmul.bf16.gmra.mxu0 %v654
        %v849 = vpop.f32.mrf.mxu0
        %v850 = vadd.f32 %v773, %v849
        %v851 = vpop.f32.mrf.mxu0
        %v852 = vadd.f32 %v775, %v851
        %853 = vdwg.mxu0
        %v854 = vld [vmem:[#allocation2 + $0x2] sm:$0xff]
        %v855 = vld [vmem:[#allocation2 + $0xa] sm:$0xff]
        %v856 = vld [vmem:[#allocation2 + $0x1a] sm:$0xff]
        %v857 = vld [vmem:[#allocation2 + $0x22] sm:$0xff]
        %v858 = vld [vmem:[#allocation2 + $0x32] sm:$0xff]
        %v859 = vld [vmem:[#allocation2 + $0x3a] sm:$0xff]
        %v860 = vld [vmem:[#allocation2 + $0x4a] sm:$0xff]
        %v861 = vld [vmem:[#allocation2 + $0x52] sm:$0xff]
        %v862 = vpack.c.bf16 %v855, %v854
        %v863 = vpack.c.bf16 %v857, %v856
        %v864 = vpack.c.bf16 %v859, %v858
        %v865 = vpack.c.bf16 %v861, %v860
        %s866 = scalar_lea.vmem %s3, 128
        %v867 = vld [vmem:[%s866] sm:$0xf]
        %v868 = vld [vmem:[%s866 + $0x4] sm:$0xf]
        %v869 = vld [vmem:[%s866 + $0x8] sm:$0xf]
        %v870 = vld [vmem:[%s866 + $0xc] sm:$0xf]
        %v871 = vld [vmem:[%s866 + $0x10] sm:$0xf]
        %v872 = vld [vmem:[%s866 + $0x14] sm:$0xf]
        %v873 = vld [vmem:[%s866 + $0x18] sm:$0xf]
        %v874 = vld [vmem:[%s866 + $0x1c] sm:$0xf]
        %v875 = vld [vmem:[%s866 + $0x20] sm:$0xf]
        %v876 = vld [vmem:[%s866 + $0x24] sm:$0xf]
        %v877 = vld [vmem:[%s866 + $0x28] sm:$0xf]
        %v878 = vld [vmem:[%s866 + $0x2c] sm:$0xf]
        %v879 = vld [vmem:[%s866 + $0x30] sm:$0xf]
        %v880 = vld [vmem:[%s866 + $0x34] sm:$0xf]
        %v881 = vld [vmem:[%s866 + $0x38] sm:$0xf]
        %v882 = vld [vmem:[%s866 + $0x3c] sm:$0xf]
        %v899 = vunpack.c.l.b16 %v867
        %v900 = vunpack.c.l.b16 %v868
        %v901 = vunpack.c.l.b16 %v869
        %v902 = vunpack.c.l.b16 %v870
        %v903 = vunpack.c.l.b16 %v871
        %v904 = vunpack.c.l.b16 %v872
        %v905 = vunpack.c.l.b16 %v873
        %v906 = vunpack.c.l.b16 %v874
        %v907 = vunpack.c.l.b16 %v875
        %v908 = vunpack.c.l.b16 %v876
        %v909 = vunpack.c.l.b16 %v877
        %v910 = vunpack.c.l.b16 %v878
        %v911 = vunpack.c.l.b16 %v879
        %v912 = vunpack.c.l.b16 %v880
        %v913 = vunpack.c.l.b16 %v881
        %v914 = vunpack.c.l.b16 %v882
        %v915 = vpack.c.b16 %v900, %v899
        %v916 = vpack.c.b16 %v902, %v901
        %v917 = vpack.c.b16 %v904, %v903
        %v918 = vpack.c.b16 %v906, %v905
        %v919 = vpack.c.b16 %v908, %v907
        %v920 = vpack.c.b16 %v910, %v909
        %v921 = vpack.c.b16 %v912, %v911
        %v922 = vpack.c.b16 %v914, %v913
        %931 = vmatpush.bf16.msra.mxu0 %v922
        %932 = vmatpush.bf16.msra.mxu0 %v921
        %933 = vmatpush.bf16.msra.mxu0 %v920
        %934 = vmatpush.bf16.msra.mxu0 %v919
        %935 = vmatpush.bf16.msra.mxu0 %v918
        %936 = vmatpush.bf16.msra.mxu0 %v917
        %937 = vmatpush.bf16.msra.mxu0 %v916
        %938 = vmatpush.bf16.msra.mxu0 %v915
        %939 = vmatmul.bf16.gmra.mxu0 %v862
        %v940 = vpop.f32.mrf.mxu0
        %v941 = vadd.f32 0.0, %v940
        %v942 = vpop.f32.mrf.mxu0
        %v943 = vadd.f32 0.0, %v942
        %944 = vmatmul.bf16.gmra.mxu0 %v863
        %v945 = vpop.f32.mrf.mxu0
        %v946 = vadd.f32 0.0, %v945
        %v947 = vpop.f32.mrf.mxu0
        %v948 = vadd.f32 0.0, %v947
        %949 = vmatmul.bf16.gmra.mxu0 %v864
        %v950 = vpop.f32.mrf.mxu0
        %v951 = vadd.f32 0.0, %v950
        %v952 = vpop.f32.mrf.mxu0
        %v953 = vadd.f32 0.0, %v952
        %954 = vmatmul.bf16.gmra.mxu0 %v865
        %v955 = vpop.f32.mrf.mxu0
        %v956 = vadd.f32 0.0, %v955
        %v957 = vpop.f32.mrf.mxu0
        %v958 = vadd.f32 0.0, %v957
        %959 = vdwg.mxu0
        %v960 = vadd.f32 %v835, %v941
        %v961 = vadd.f32 %v837, %v943
        %v962 = vadd.f32 %v840, %v946
        %v963 = vadd.f32 %v842, %v948
        %v964 = vadd.f32 %v845, %v951
        %v965 = vadd.f32 %v847, %v953
        %v966 = vadd.f32 %v850, %v956
        %v967 = vadd.f32 %v852, %v958
        %v968 = vld [vmem:[%s4] sm:$0x1]
        %v970 = vperm.slane %v968, 0
        %v972 = vadd.f32 %v960, %v970
        %v973 = vadd.f32 %v961, %v970
        %v974 = vadd.f32 %v962, %v970
        %v975 = vadd.f32 %v963, %v970
        %v976 = vadd.f32 %v964, %v970
        %v977 = vadd.f32 %v965, %v970
        %v978 = vadd.f32 %v966, %v970
        %v979 = vadd.f32 %v967, %v970
        %v980 = vmax.f32 %v972, 0.0
        %v981 = vmax.f32 %v973, 0.0
        %v982 = vmax.f32 %v974, 0.0
        %v983 = vmax.f32 %v975, 0.0
        %v984 = vmax.f32 %v976, 0.0
        %v985 = vmax.f32 %v977, 0.0
        %v986 = vmax.f32 %v978, 0.0
        %v987 = vmax.f32 %v979, 0.0
        %988 = vst [vmem:[#allocation3] sm:$0xff] %v980
        %989 = vst [vmem:[#allocation3 + $0x8] sm:$0xff] %v981
        %990 = vst [vmem:[#allocation3 + $0x10] sm:$0xff] %v982
        %991 = vst [vmem:[#allocation3 + $0x18] sm:$0xff] %v983
        %992 = vst [vmem:[#allocation3 + $0x20] sm:$0xff] %v984
        %993 = vst [vmem:[#allocation3 + $0x28] sm:$0xff] %v985
        %994 = vst [vmem:[#allocation3 + $0x30] sm:$0xff] %v986
        %995 = vst [vmem:[#allocation3 + $0x38] sm:$0xff] %v987
        %v996 = vld [vmem:[#allocation3] sm:$0x1]
        %v997 = vld [vmem:[#allocation3 + $0x10] sm:$0x1]
        %v998 = vld [vmem:[#allocation3 + $0x20] sm:$0x1]
        %v999 = vld [vmem:[#allocation3 + $0x30] sm:$0x1]
        %v1004 = vrot.slane %v997, 7
        %vm1005 = vcmask 1041409
        %v1006 = vsel %vm1005, %v1004, %v996
        %vm1007 = vcmask 1045509
        %v1008 = vsel %vm1007, %v1004, %v1006
        %v1009 = vrot.slane %v998, 6
        %vm1010 = vcmask 1042434
        %v1011 = vsel %vm1010, %v1009, %v1008
        %vm1012 = vcmask 1046534
        %v1013 = vsel %vm1012, %v1009, %v1011
        %v1014 = vrot.slane %v999, 5
        %vm1015 = vcmask 1043459
        %v1016 = vsel %vm1015, %v1014, %v1013
        %vm1017 = vcmask 1047559
        %v1018 = vsel %vm1017, %v1014, %v1016
        %1020 = vst [vmem:[#allocation4] sm:$0xf] %v1018
        %v1021 = vld [vmem:[#allocation3 + $0x1] sm:$0x1]
        %v1022 = vld [vmem:[#allocation3 + $0x11] sm:$0x1]
        %v1023 = vld [vmem:[#allocation3 + $0x21] sm:$0x1]
        %v1024 = vld [vmem:[#allocation3 + $0x31] sm:$0x1]
        %v1029 = vrot.slane %v1022, 7
        %v1030 = vsel %vm1005, %v1029, %v1021
        %v1031 = vsel %vm1007, %v1029, %v1030
        %v1032 = vrot.slane %v1023, 6
        %v1033 = vsel %vm1010, %v1032, %v1031
        %v1034 = vsel %vm1012, %v1032, %v1033
        %v1035 = vrot.slane %v1024, 5
        %v1036 = vsel %vm1015, %v1035, %v1034
        %v1037 = vsel %vm1017, %v1035, %v1036
        %1039 = vst [vmem:[#allocation4 + $0x4] sm:$0xf] %v1037
        %v1040 = vld [vmem:[#allocation3 + $0x2] sm:$0x1]
        %v1041 = vld [vmem:[#allocation3 + $0x12] sm:$0x1]
        %v1042 = vld [vmem:[#allocation3 + $0x22] sm:$0x1]
        %v1043 = vld [vmem:[#allocation3 + $0x32] sm:$0x1]
        %v1048 = vrot.slane %v1041, 7
        %v1049 = vsel %vm1005, %v1048, %v1040
        %v1050 = vsel %vm1007, %v1048, %v1049
        %v1051 = vrot.slane %v1042, 6
        %v1052 = vsel %vm1010, %v1051, %v1050
        %v1053 = vsel %vm1012, %v1051, %v1052
        %v1054 = vrot.slane %v1043, 5
        %v1055 = vsel %vm1015, %v1054, %v1053
        %v1056 = vsel %vm1017, %v1054, %v1055
        %1058 = vst [vmem:[#allocation4 + $0x8] sm:$0xf] %v1056
        %v1059 = vld [vmem:[#allocation3 + $0x3] sm:$0x1]
        %v1060 = vld [vmem:[#allocation3 + $0x13] sm:$0x1]
        %v1061 = vld [vmem:[#allocation3 + $0x23] sm:$0x1]
        %v1062 = vld [vmem:[#allocation3 + $0x33] sm:$0x1]
        %v1067 = vrot.slane %v1060, 7
        %v1068 = vsel %vm1005, %v1067, %v1059
        %v1069 = vsel %vm1007, %v1067, %v1068
        %v1070 = vrot.slane %v1061, 6
        %v1071 = vsel %vm1010, %v1070, %v1069
        %v1072 = vsel %vm1012, %v1070, %v1071
        %v1073 = vrot.slane %v1062, 5
        %v1074 = vsel %vm1015, %v1073, %v1072
        %v1075 = vsel %vm1017, %v1073, %v1074
        %1077 = vst [vmem:[#allocation4 + $0xc] sm:$0xf] %v1075
        %v1078 = vld [vmem:[#allocation3 + $0x4] sm:$0x1]
        %v1079 = vld [vmem:[#allocation3 + $0x14] sm:$0x1]
        %v1080 = vld [vmem:[#allocation3 + $0x24] sm:$0x1]
        %v1081 = vld [vmem:[#allocation3 + $0x34] sm:$0x1]
        %v1086 = vrot.slane %v1079, 7
        %v1087 = vsel %vm1005, %v1086, %v1078
        %v1088 = vsel %vm1007, %v1086, %v1087
        %v1089 = vrot.slane %v1080, 6
        %v1090 = vsel %vm1010, %v1089, %v1088
        %v1091 = vsel %vm1012, %v1089, %v1090
        %v1092 = vrot.slane %v1081, 5
        %v1093 = vsel %vm1015, %v1092, %v1091
        %v1094 = vsel %vm1017, %v1092, %v1093
        %1096 = vst [vmem:[#allocation4 + $0x10] sm:$0xf] %v1094
        %v1097 = vld [vmem:[#allocation3 + $0x5] sm:$0x1]
        %v1098 = vld [vmem:[#allocation3 + $0x15] sm:$0x1]
        %v1099 = vld [vmem:[#allocation3 + $0x25] sm:$0x1]
        %v1100 = vld [vmem:[#allocation3 + $0x35] sm:$0x1]
        %v1105 = vrot.slane %v1098, 7
        %v1106 = vsel %vm1005, %v1105, %v1097
        %v1107 = vsel %vm1007, %v1105, %v1106
        %v1108 = vrot.slane %v1099, 6
        %v1109 = vsel %vm1010, %v1108, %v1107
        %v1110 = vsel %vm1012, %v1108, %v1109
        %v1111 = vrot.slane %v1100, 5
        %v1112 = vsel %vm1015, %v1111, %v1110
        %v1113 = vsel %vm1017, %v1111, %v1112
        %1115 = vst [vmem:[#allocation4 + $0x14] sm:$0xf] %v1113
        %v1116 = vld [vmem:[#allocation3 + $0x6] sm:$0x1]
        %v1117 = vld [vmem:[#allocation3 + $0x16] sm:$0x1]
        %v1118 = vld [vmem:[#allocation3 + $0x26] sm:$0x1]
        %v1119 = vld [vmem:[#allocation3 + $0x36] sm:$0x1]
        %v1124 = vrot.slane %v1117, 7
        %v1125 = vsel %vm1005, %v1124, %v1116
        %v1126 = vsel %vm1007, %v1124, %v1125
        %v1127 = vrot.slane %v1118, 6
        %v1128 = vsel %vm1010, %v1127, %v1126
        %v1129 = vsel %vm1012, %v1127, %v1128
        %v1130 = vrot.slane %v1119, 5
        %v1131 = vsel %vm1015, %v1130, %v1129
        %v1132 = vsel %vm1017, %v1130, %v1131
        %1134 = vst [vmem:[#allocation4 + $0x18] sm:$0xf] %v1132
        %v1135 = vld [vmem:[#allocation3 + $0x7] sm:$0x1]
        %v1136 = vld [vmem:[#allocation3 + $0x17] sm:$0x1]
        %v1137 = vld [vmem:[#allocation3 + $0x27] sm:$0x1]
        %v1138 = vld [vmem:[#allocation3 + $0x37] sm:$0x1]
        %v1143 = vrot.slane %v1136, 7
        %v1144 = vsel %vm1005, %v1143, %v1135
        %v1145 = vsel %vm1007, %v1143, %v1144
        %v1146 = vrot.slane %v1137, 6
        %v1147 = vsel %vm1010, %v1146, %v1145
        %v1148 = vsel %vm1012, %v1146, %v1147
        %v1149 = vrot.slane %v1138, 5
        %v1150 = vsel %vm1015, %v1149, %v1148
        %v1151 = vsel %vm1017, %v1149, %v1150
        %1153 = vst [vmem:[#allocation4 + $0x1c] sm:$0xf] %v1151
        %v1154 = vld [vmem:[#allocation3 + $0x8] sm:$0x1]
        %v1155 = vld [vmem:[#allocation3 + $0x18] sm:$0x1]
        %v1156 = vld [vmem:[#allocation3 + $0x28] sm:$0x1]
        %v1157 = vld [vmem:[#allocation3 + $0x38] sm:$0x1]
        %v1162 = vrot.slane %v1155, 7
        %v1163 = vsel %vm1005, %v1162, %v1154
        %v1164 = vsel %vm1007, %v1162, %v1163
        %v1165 = vrot.slane %v1156, 6
        %v1166 = vsel %vm1010, %v1165, %v1164
        %v1167 = vsel %vm1012, %v1165, %v1166
        %v1168 = vrot.slane %v1157, 5
        %v1169 = vsel %vm1015, %v1168, %v1167
        %v1170 = vsel %vm1017, %v1168, %v1169
        %1172 = vst [vmem:[#allocation4 + $0x20] sm:$0xf] %v1170
        %v1173 = vld [vmem:[#allocation3 + $0x9] sm:$0x1]
        %v1174 = vld [vmem:[#allocation3 + $0x19] sm:$0x1]
        %v1175 = vld [vmem:[#allocation3 + $0x29] sm:$0x1]
        %v1176 = vld [vmem:[#allocation3 + $0x39] sm:$0x1]
        %v1181 = vrot.slane %v1174, 7
        %v1182 = vsel %vm1005, %v1181, %v1173
        %v1183 = vsel %vm1007, %v1181, %v1182
        %v1184 = vrot.slane %v1175, 6
        %v1185 = vsel %vm1010, %v1184, %v1183
        %v1186 = vsel %vm1012, %v1184, %v1185
        %v1187 = vrot.slane %v1176, 5
        %v1188 = vsel %vm1015, %v1187, %v1186
        %v1189 = vsel %vm1017, %v1187, %v1188
        %1191 = vst [vmem:[#allocation4 + $0x24] sm:$0xf] %v1189
        %v1192 = vld [vmem:[#allocation3 + $0xa] sm:$0x1]
        %v1193 = vld [vmem:[#allocation3 + $0x1a] sm:$0x1]
        %v1194 = vld [vmem:[#allocation3 + $0x2a] sm:$0x1]
        %v1195 = vld [vmem:[#allocation3 + $0x3a] sm:$0x1]
        %v1200 = vrot.slane %v1193, 7
        %v1201 = vsel %vm1005, %v1200, %v1192
        %v1202 = vsel %vm1007, %v1200, %v1201
        %v1203 = vrot.slane %v1194, 6
        %v1204 = vsel %vm1010, %v1203, %v1202
        %v1205 = vsel %vm1012, %v1203, %v1204
        %v1206 = vrot.slane %v1195, 5
        %v1207 = vsel %vm1015, %v1206, %v1205
        %v1208 = vsel %vm1017, %v1206, %v1207
        %1210 = vst [vmem:[#allocation4 + $0x28] sm:$0xf] %v1208
        %v1211 = vld [vmem:[#allocation3 + $0xb] sm:$0x1]
        %v1212 = vld [vmem:[#allocation3 + $0x1b] sm:$0x1]
        %v1213 = vld [vmem:[#allocation3 + $0x2b] sm:$0x1]
        %v1214 = vld [vmem:[#allocation3 + $0x3b] sm:$0x1]
        %v1219 = vrot.slane %v1212, 7
        %v1220 = vsel %vm1005, %v1219, %v1211
        %v1221 = vsel %vm1007, %v1219, %v1220
        %v1222 = vrot.slane %v1213, 6
        %v1223 = vsel %vm1010, %v1222, %v1221
        %v1224 = vsel %vm1012, %v1222, %v1223
        %v1225 = vrot.slane %v1214, 5
        %v1226 = vsel %vm1015, %v1225, %v1224
        %v1227 = vsel %vm1017, %v1225, %v1226
        %1229 = vst [vmem:[#allocation4 + $0x2c] sm:$0xf] %v1227
        %v1230 = vld [vmem:[#allocation3 + $0xc] sm:$0x1]
        %v1231 = vld [vmem:[#allocation3 + $0x1c] sm:$0x1]
        %v1232 = vld [vmem:[#allocation3 + $0x2c] sm:$0x1]
        %v1233 = vld [vmem:[#allocation3 + $0x3c] sm:$0x1]
        %v1238 = vrot.slane %v1231, 7
        %v1239 = vsel %vm1005, %v1238, %v1230
        %v1240 = vsel %vm1007, %v1238, %v1239
        %v1241 = vrot.slane %v1232, 6
        %v1242 = vsel %vm1010, %v1241, %v1240
        %v1243 = vsel %vm1012, %v1241, %v1242
        %v1244 = vrot.slane %v1233, 5
        %v1245 = vsel %vm1015, %v1244, %v1243
        %v1246 = vsel %vm1017, %v1244, %v1245
        %1248 = vst [vmem:[#allocation4 + $0x30] sm:$0xf] %v1246
        %v1249 = vld [vmem:[#allocation3 + $0xd] sm:$0x1]
        %v1250 = vld [vmem:[#allocation3 + $0x1d] sm:$0x1]
        %v1251 = vld [vmem:[#allocation3 + $0x2d] sm:$0x1]
        %v1252 = vld [vmem:[#allocation3 + $0x3d] sm:$0x1]
        %v1257 = vrot.slane %v1250, 7
        %v1258 = vsel %vm1005, %v1257, %v1249
        %v1259 = vsel %vm1007, %v1257, %v1258
        %v1260 = vrot.slane %v1251, 6
        %v1261 = vsel %vm1010, %v1260, %v1259
        %v1262 = vsel %vm1012, %v1260, %v1261
        %v1263 = vrot.slane %v1252, 5
        %v1264 = vsel %vm1015, %v1263, %v1262
        %v1265 = vsel %vm1017, %v1263, %v1264
        %1267 = vst [vmem:[#allocation4 + $0x34] sm:$0xf] %v1265
        %v1268 = vld [vmem:[#allocation3 + $0xe] sm:$0x1]
        %v1269 = vld [vmem:[#allocation3 + $0x1e] sm:$0x1]
        %v1270 = vld [vmem:[#allocation3 + $0x2e] sm:$0x1]
        %v1271 = vld [vmem:[#allocation3 + $0x3e] sm:$0x1]
        %v1276 = vrot.slane %v1269, 7
        %v1277 = vsel %vm1005, %v1276, %v1268
        %v1278 = vsel %vm1007, %v1276, %v1277
        %v1279 = vrot.slane %v1270, 6
        %v1280 = vsel %vm1010, %v1279, %v1278
        %v1281 = vsel %vm1012, %v1279, %v1280
        %v1282 = vrot.slane %v1271, 5
        %v1283 = vsel %vm1015, %v1282, %v1281
        %v1284 = vsel %vm1017, %v1282, %v1283
        %1286 = vst [vmem:[#allocation4 + $0x38] sm:$0xf] %v1284
        %v1287 = vld [vmem:[#allocation3 + $0xf] sm:$0x1]
        %v1288 = vld [vmem:[#allocation3 + $0x1f] sm:$0x1]
        %v1289 = vld [vmem:[#allocation3 + $0x2f] sm:$0x1]
        %v1290 = vld [vmem:[#allocation3 + $0x3f] sm:$0x1]
        %v1295 = vrot.slane %v1288, 7
        %v1296 = vsel %vm1005, %v1295, %v1287
        %v1297 = vsel %vm1007, %v1295, %v1296
        %v1298 = vrot.slane %v1289, 6
        %v1299 = vsel %vm1010, %v1298, %v1297
        %v1300 = vsel %vm1012, %v1298, %v1299
        %v1301 = vrot.slane %v1290, 5
        %v1302 = vsel %vm1015, %v1301, %v1300
        %v1303 = vsel %vm1017, %v1301, %v1302
        %1305 = vst [vmem:[#allocation4 + $0x3c] sm:$0xf] %v1303
        %v1306 = vld [vmem:[#allocation4] sm:$0xff]
        %v1307 = vld [vmem:[#allocation4 + $0x8] sm:$0xff]
        %v1308 = vld [vmem:[#allocation4 + $0x10] sm:$0xff]
        %v1309 = vld [vmem:[#allocation4 + $0x18] sm:$0xff]
        %v1310 = vld [vmem:[#allocation4 + $0x20] sm:$0xff]
        %v1311 = vld [vmem:[#allocation4 + $0x28] sm:$0xff]
        %v1312 = vld [vmem:[#allocation4 + $0x30] sm:$0xff]
        %v1313 = vld [vmem:[#allocation4 + $0x38] sm:$0xff]
        %1322 = vst [vmem:[#allocation1] ss:$2 sm:$0xff] %v1306
        %s1323 = scalar_lea.vmem [#allocation1], 16
        %1324 = vst [vmem:[%s1323] ss:$2 sm:$0xff] %v1307
        %s1325 = scalar_lea.vmem [#allocation1], 32
        %1326 = vst [vmem:[%s1325] ss:$2 sm:$0xff] %v1308
        %s1327 = scalar_lea.vmem [#allocation1], 48
        %1328 = vst [vmem:[%s1327] ss:$2 sm:$0xff] %v1309
        %v1329 = vld.sshfl [vmem:[#allocation1] sm:$0xff pattern:$0x75316420]
        %v1330 = vld.sshfl [vmem:[#allocation1 + $0x8] sm:$0xff pattern:$0x75316420]
        %v1331 = vld.sshfl [vmem:[#allocation1 + $0x10] sm:$0xff pattern:$0x75316420]
        %v1332 = vld.sshfl [vmem:[#allocation1 + $0x18] sm:$0xff pattern:$0x75316420]
        %v1333 = vld.sshfl [vmem:[#allocation1 + $0x20] sm:$0xff pattern:$0x75316420]
        %v1334 = vld.sshfl [vmem:[#allocation1 + $0x28] sm:$0xff pattern:$0x75316420]
        %v1335 = vld.sshfl [vmem:[#allocation1 + $0x30] sm:$0xff pattern:$0x75316420]
        %v1336 = vld.sshfl [vmem:[#allocation1 + $0x38] sm:$0xff pattern:$0x75316420]
        %1337 = vst [vmem:[#allocation1] ss:$2 sm:$0xff] %v1310
        %1338 = vst [vmem:[%s1323] ss:$2 sm:$0xff] %v1311
        %1339 = vst [vmem:[%s1325] ss:$2 sm:$0xff] %v1312
        %1340 = vst [vmem:[%s1327] ss:$2 sm:$0xff] %v1313
        %v1341 = vld.sshfl [vmem:[#allocation1] sm:$0xff pattern:$0x75316420]
        %v1342 = vld.sshfl [vmem:[#allocation1 + $0x8] sm:$0xff pattern:$0x75316420]
        %v1343 = vld.sshfl [vmem:[#allocation1 + $0x10] sm:$0xff pattern:$0x75316420]
        %v1344 = vld.sshfl [vmem:[#allocation1 + $0x18] sm:$0xff pattern:$0x75316420]
        %v1345 = vld.sshfl [vmem:[#allocation1 + $0x20] sm:$0xff pattern:$0x75316420]
        %v1346 = vld.sshfl [vmem:[#allocation1 + $0x28] sm:$0xff pattern:$0x75316420]
        %v1347 = vld.sshfl [vmem:[#allocation1 + $0x30] sm:$0xff pattern:$0x75316420]
        %v1348 = vld.sshfl [vmem:[#allocation1 + $0x38] sm:$0xff pattern:$0x75316420]
        %v1365 = vpack.c.bf16 %v1329, %v1329
        %v1366 = vpack.c.bf16 %v1330, %v1330
        %v1367 = vpack.c.bf16 %v1331, %v1331
        %v1368 = vpack.c.bf16 %v1332, %v1332
        %v1369 = vpack.c.bf16 %v1333, %v1333
        %v1370 = vpack.c.bf16 %v1334, %v1334
        %v1371 = vpack.c.bf16 %v1335, %v1335
        %v1372 = vpack.c.bf16 %v1336, %v1336
        %v1373 = vpack.c.bf16 %v1341, %v1341
        %v1374 = vpack.c.bf16 %v1342, %v1342
        %v1375 = vpack.c.bf16 %v1343, %v1343
        %v1376 = vpack.c.bf16 %v1344, %v1344
        %v1377 = vpack.c.bf16 %v1345, %v1345
        %v1378 = vpack.c.bf16 %v1346, %v1346
        %v1379 = vpack.c.bf16 %v1347, %v1347
        %v1380 = vpack.c.bf16 %v1348, %v1348
        %v1381 = vld [vmem:[%s5] sm:$0xf]
        %v1382 = vld [vmem:[%s5 + $0x4] sm:$0xf]
        %v1383 = vld [vmem:[%s5 + $0x8] sm:$0xf]
        %v1384 = vld [vmem:[%s5 + $0xc] sm:$0xf]
        %v1385 = vld [vmem:[%s5 + $0x10] sm:$0xf]
        %v1386 = vld [vmem:[%s5 + $0x14] sm:$0xf]
        %v1387 = vld [vmem:[%s5 + $0x18] sm:$0xf]
        %v1388 = vld [vmem:[%s5 + $0x1c] sm:$0xf]
        %v1389 = vld [vmem:[%s5 + $0x20] sm:$0xf]
        %v1390 = vld [vmem:[%s5 + $0x24] sm:$0xf]
        %v1391 = vld [vmem:[%s5 + $0x28] sm:$0xf]
        %v1392 = vld [vmem:[%s5 + $0x2c] sm:$0xf]
        %v1393 = vld [vmem:[%s5 + $0x30] sm:$0xf]
        %v1394 = vld [vmem:[%s5 + $0x34] sm:$0xf]
        %v1395 = vld [vmem:[%s5 + $0x38] sm:$0xf]
        %v1396 = vld [vmem:[%s5 + $0x3c] sm:$0xf]
        %v1397 = vld [vmem:[%s5 + $0x40] sm:$0xf]
        %v1398 = vld [vmem:[%s5 + $0x44] sm:$0xf]
        %v1399 = vld [vmem:[%s5 + $0x48] sm:$0xf]
        %v1400 = vld [vmem:[%s5 + $0x4c] sm:$0xf]
        %v1401 = vld [vmem:[%s5 + $0x50] sm:$0xf]
        %v1402 = vld [vmem:[%s5 + $0x54] sm:$0xf]
        %v1403 = vld [vmem:[%s5 + $0x58] sm:$0xf]
        %v1404 = vld [vmem:[%s5 + $0x5c] sm:$0xf]
        %v1405 = vld [vmem:[%s5 + $0x60] sm:$0xf]
        %v1406 = vld [vmem:[%s5 + $0x64] sm:$0xf]
        %v1407 = vld [vmem:[%s5 + $0x68] sm:$0xf]
        %v1408 = vld [vmem:[%s5 + $0x6c] sm:$0xf]
        %v1409 = vld [vmem:[%s5 + $0x70] sm:$0xf]
        %v1410 = vld [vmem:[%s5 + $0x74] sm:$0xf]
        %v1411 = vld [vmem:[%s5 + $0x78] sm:$0xf]
        %v1412 = vld [vmem:[%s5 + $0x7c] sm:$0xf]
        %v1413 = vld [vmem:[%s5 + $0x80] sm:$0xf]
        %v1414 = vld [vmem:[%s5 + $0x84] sm:$0xf]
        %v1415 = vld [vmem:[%s5 + $0x88] sm:$0xf]
        %v1416 = vld [vmem:[%s5 + $0x8c] sm:$0xf]
        %v1417 = vld [vmem:[%s5 + $0x90] sm:$0xf]
        %v1418 = vld [vmem:[%s5 + $0x94] sm:$0xf]
        %v1419 = vld [vmem:[%s5 + $0x98] sm:$0xf]
        %v1420 = vld [vmem:[%s5 + $0x9c] sm:$0xf]
        %v1421 = vld [vmem:[%s5 + $0xa0] sm:$0xf]
        %v1422 = vld [vmem:[%s5 + $0xa4] sm:$0xf]
        %v1423 = vld [vmem:[%s5 + $0xa8] sm:$0xf]
        %v1424 = vld [vmem:[%s5 + $0xac] sm:$0xf]
        %v1425 = vld [vmem:[%s5 + $0xb0] sm:$0xf]
        %v1426 = vld [vmem:[%s5 + $0xb4] sm:$0xf]
        %v1427 = vld [vmem:[%s5 + $0xb8] sm:$0xf]
        %v1428 = vld [vmem:[%s5 + $0xbc] sm:$0xf]
        %v1429 = vld [vmem:[%s5 + $0xc0] sm:$0xf]
        %v1430 = vld [vmem:[%s5 + $0xc4] sm:$0xf]
        %v1431 = vld [vmem:[%s5 + $0xc8] sm:$0xf]
        %v1432 = vld [vmem:[%s5 + $0xcc] sm:$0xf]
        %v1433 = vld [vmem:[%s5 + $0xd0] sm:$0xf]
        %v1434 = vld [vmem:[%s5 + $0xd4] sm:$0xf]
        %v1435 = vld [vmem:[%s5 + $0xd8] sm:$0xf]
        %v1436 = vld [vmem:[%s5 + $0xdc] sm:$0xf]
        %v1437 = vld [vmem:[%s5 + $0xe0] sm:$0xf]
        %v1438 = vld [vmem:[%s5 + $0xe4] sm:$0xf]
        %v1439 = vld [vmem:[%s5 + $0xe8] sm:$0xf]
        %v1440 = vld [vmem:[%s5 + $0xec] sm:$0xf]
        %v1441 = vld [vmem:[%s5 + $0xf0] sm:$0xf]
        %v1442 = vld [vmem:[%s5 + $0xf4] sm:$0xf]
        %v1443 = vld [vmem:[%s5 + $0xf8] sm:$0xf]
        %v1444 = vld [vmem:[%s5 + $0xfc] sm:$0xf]
        %v1445 = vld [vmem:[%s5 + $0x100] sm:$0xf]
        %v1446 = vld [vmem:[%s5 + $0x104] sm:$0xf]
        %v1447 = vld [vmem:[%s5 + $0x108] sm:$0xf]
        %v1448 = vld [vmem:[%s5 + $0x10c] sm:$0xf]
        %v1449 = vld [vmem:[%s5 + $0x110] sm:$0xf]
        %v1450 = vld [vmem:[%s5 + $0x114] sm:$0xf]
        %v1451 = vld [vmem:[%s5 + $0x118] sm:$0xf]
        %v1452 = vld [vmem:[%s5 + $0x11c] sm:$0xf]
        %v1453 = vld [vmem:[%s5 + $0x120] sm:$0xf]
        %v1454 = vld [vmem:[%s5 + $0x124] sm:$0xf]
        %v1455 = vld [vmem:[%s5 + $0x128] sm:$0xf]
        %v1456 = vld [vmem:[%s5 + $0x12c] sm:$0xf]
        %v1457 = vld [vmem:[%s5 + $0x130] sm:$0xf]
        %v1458 = vld [vmem:[%s5 + $0x134] sm:$0xf]
        %v1459 = vld [vmem:[%s5 + $0x138] sm:$0xf]
        %v1460 = vld [vmem:[%s5 + $0x13c] sm:$0xf]
        %v1461 = vld [vmem:[%s5 + $0x140] sm:$0xf]
        %v1462 = vld [vmem:[%s5 + $0x144] sm:$0xf]
        %v1463 = vld [vmem:[%s5 + $0x148] sm:$0xf]
        %v1464 = vld [vmem:[%s5 + $0x14c] sm:$0xf]
        %v1465 = vld [vmem:[%s5 + $0x150] sm:$0xf]
        %v1466 = vld [vmem:[%s5 + $0x154] sm:$0xf]
        %v1467 = vld [vmem:[%s5 + $0x158] sm:$0xf]
        %v1468 = vld [vmem:[%s5 + $0x15c] sm:$0xf]
        %v1469 = vld [vmem:[%s5 + $0x160] sm:$0xf]
        %v1470 = vld [vmem:[%s5 + $0x164] sm:$0xf]
        %v1471 = vld [vmem:[%s5 + $0x168] sm:$0xf]
        %v1472 = vld [vmem:[%s5 + $0x16c] sm:$0xf]
        %v1473 = vld [vmem:[%s5 + $0x170] sm:$0xf]
        %v1474 = vld [vmem:[%s5 + $0x174] sm:$0xf]
        %v1475 = vld [vmem:[%s5 + $0x178] sm:$0xf]
        %v1476 = vld [vmem:[%s5 + $0x17c] sm:$0xf]
        %v1477 = vld [vmem:[%s5 + $0x180] sm:$0xf]
        %v1478 = vld [vmem:[%s5 + $0x184] sm:$0xf]
        %v1479 = vld [vmem:[%s5 + $0x188] sm:$0xf]
        %v1480 = vld [vmem:[%s5 + $0x18c] sm:$0xf]
        %v1481 = vld [vmem:[%s5 + $0x190] sm:$0xf]
        %v1482 = vld [vmem:[%s5 + $0x194] sm:$0xf]
        %v1483 = vld [vmem:[%s5 + $0x198] sm:$0xf]
        %v1484 = vld [vmem:[%s5 + $0x19c] sm:$0xf]
        %v1485 = vld [vmem:[%s5 + $0x1a0] sm:$0xf]
        %v1486 = vld [vmem:[%s5 + $0x1a4] sm:$0xf]
        %v1487 = vld [vmem:[%s5 + $0x1a8] sm:$0xf]
        %v1488 = vld [vmem:[%s5 + $0x1ac] sm:$0xf]
        %v1489 = vld [vmem:[%s5 + $0x1b0] sm:$0xf]
        %v1490 = vld [vmem:[%s5 + $0x1b4] sm:$0xf]
        %v1491 = vld [vmem:[%s5 + $0x1b8] sm:$0xf]
        %v1492 = vld [vmem:[%s5 + $0x1bc] sm:$0xf]
        %v1493 = vld [vmem:[%s5 + $0x1c0] sm:$0xf]
        %v1494 = vld [vmem:[%s5 + $0x1c4] sm:$0xf]
        %v1495 = vld [vmem:[%s5 + $0x1c8] sm:$0xf]
        %v1496 = vld [vmem:[%s5 + $0x1cc] sm:$0xf]
        %v1497 = vld [vmem:[%s5 + $0x1d0] sm:$0xf]
        %v1498 = vld [vmem:[%s5 + $0x1d4] sm:$0xf]
        %v1499 = vld [vmem:[%s5 + $0x1d8] sm:$0xf]
        %v1500 = vld [vmem:[%s5 + $0x1dc] sm:$0xf]
        %v1501 = vld [vmem:[%s5 + $0x1e0] sm:$0xf]
        %v1502 = vld [vmem:[%s5 + $0x1e4] sm:$0xf]
        %v1503 = vld [vmem:[%s5 + $0x1e8] sm:$0xf]
        %v1504 = vld [vmem:[%s5 + $0x1ec] sm:$0xf]
        %v1505 = vld [vmem:[%s5 + $0x1f0] sm:$0xf]
        %v1506 = vld [vmem:[%s5 + $0x1f4] sm:$0xf]
        %v1507 = vld [vmem:[%s5 + $0x1f8] sm:$0xf]
        %v1508 = vld [vmem:[%s5 + $0x1fc] sm:$0xf]
        %v1509 = vld [vmem:[%s5 + $0x200] sm:$0xf]
        %v1510 = vld [vmem:[%s5 + $0x204] sm:$0xf]
        %v1511 = vld [vmem:[%s5 + $0x208] sm:$0xf]
        %v1512 = vld [vmem:[%s5 + $0x20c] sm:$0xf]
        %v1513 = vld [vmem:[%s5 + $0x210] sm:$0xf]
        %v1514 = vld [vmem:[%s5 + $0x214] sm:$0xf]
        %v1515 = vld [vmem:[%s5 + $0x218] sm:$0xf]
        %v1516 = vld [vmem:[%s5 + $0x21c] sm:$0xf]
        %v1517 = vld [vmem:[%s5 + $0x220] sm:$0xf]
        %v1518 = vld [vmem:[%s5 + $0x224] sm:$0xf]
        %v1519 = vld [vmem:[%s5 + $0x228] sm:$0xf]
        %v1520 = vld [vmem:[%s5 + $0x22c] sm:$0xf]
        %v1521 = vld [vmem:[%s5 + $0x230] sm:$0xf]
        %v1522 = vld [vmem:[%s5 + $0x234] sm:$0xf]
        %v1523 = vld [vmem:[%s5 + $0x238] sm:$0xf]
        %v1524 = vld [vmem:[%s5 + $0x23c] sm:$0xf]
        %v1525 = vld [vmem:[%s5 + $0x240] sm:$0xf]
        %v1526 = vld [vmem:[%s5 + $0x244] sm:$0xf]
        %v1527 = vld [vmem:[%s5 + $0x248] sm:$0xf]
        %v1528 = vld [vmem:[%s5 + $0x24c] sm:$0xf]
        %v1529 = vld [vmem:[%s5 + $0x250] sm:$0xf]
        %v1530 = vld [vmem:[%s5 + $0x254] sm:$0xf]
        %v1531 = vld [vmem:[%s5 + $0x258] sm:$0xf]
        %v1532 = vld [vmem:[%s5 + $0x25c] sm:$0xf]
        %v1533 = vld [vmem:[%s5 + $0x260] sm:$0xf]
        %v1534 = vld [vmem:[%s5 + $0x264] sm:$0xf]
        %v1535 = vld [vmem:[%s5 + $0x268] sm:$0xf]
        %v1536 = vld [vmem:[%s5 + $0x26c] sm:$0xf]
        %v1537 = vld [vmem:[%s5 + $0x270] sm:$0xf]
        %v1538 = vld [vmem:[%s5 + $0x274] sm:$0xf]
        %v1539 = vld [vmem:[%s5 + $0x278] sm:$0xf]
        %v1540 = vld [vmem:[%s5 + $0x27c] sm:$0xf]
        %v1541 = vld [vmem:[%s5 + $0x280] sm:$0xf]
        %v1542 = vld [vmem:[%s5 + $0x284] sm:$0xf]
        %v1543 = vld [vmem:[%s5 + $0x288] sm:$0xf]
        %v1544 = vld [vmem:[%s5 + $0x28c] sm:$0xf]
        %v1545 = vld [vmem:[%s5 + $0x290] sm:$0xf]
        %v1546 = vld [vmem:[%s5 + $0x294] sm:$0xf]
        %v1547 = vld [vmem:[%s5 + $0x298] sm:$0xf]
        %v1548 = vld [vmem:[%s5 + $0x29c] sm:$0xf]
        %v1549 = vld [vmem:[%s5 + $0x2a0] sm:$0xf]
        %v1550 = vld [vmem:[%s5 + $0x2a4] sm:$0xf]
        %v1551 = vld [vmem:[%s5 + $0x2a8] sm:$0xf]
        %v1552 = vld [vmem:[%s5 + $0x2ac] sm:$0xf]
        %v1553 = vld [vmem:[%s5 + $0x2b0] sm:$0xf]
        %v1554 = vld [vmem:[%s5 + $0x2b4] sm:$0xf]
        %v1555 = vld [vmem:[%s5 + $0x2b8] sm:$0xf]
        %v1556 = vld [vmem:[%s5 + $0x2bc] sm:$0xf]
        %v1557 = vld [vmem:[%s5 + $0x2c0] sm:$0xf]
        %v1558 = vld [vmem:[%s5 + $0x2c4] sm:$0xf]
        %v1559 = vld [vmem:[%s5 + $0x2c8] sm:$0xf]
        %v1560 = vld [vmem:[%s5 + $0x2cc] sm:$0xf]
        %v1561 = vld [vmem:[%s5 + $0x2d0] sm:$0xf]
        %v1562 = vld [vmem:[%s5 + $0x2d4] sm:$0xf]
        %v1563 = vld [vmem:[%s5 + $0x2d8] sm:$0xf]
        %v1564 = vld [vmem:[%s5 + $0x2dc] sm:$0xf]
        %v1565 = vld [vmem:[%s5 + $0x2e0] sm:$0xf]
        %v1566 = vld [vmem:[%s5 + $0x2e4] sm:$0xf]
        %v1567 = vld [vmem:[%s5 + $0x2e8] sm:$0xf]
        %v1568 = vld [vmem:[%s5 + $0x2ec] sm:$0xf]
        %v1569 = vld [vmem:[%s5 + $0x2f0] sm:$0xf]
        %v1570 = vld [vmem:[%s5 + $0x2f4] sm:$0xf]
        %v1571 = vld [vmem:[%s5 + $0x2f8] sm:$0xf]
        %v1572 = vld [vmem:[%s5 + $0x2fc] sm:$0xf]
        %v1573 = vld [vmem:[%s5 + $0x300] sm:$0xf]
        %v1574 = vld [vmem:[%s5 + $0x304] sm:$0xf]
        %v1575 = vld [vmem:[%s5 + $0x308] sm:$0xf]
        %v1576 = vld [vmem:[%s5 + $0x30c] sm:$0xf]
        %v1577 = vld [vmem:[%s5 + $0x310] sm:$0xf]
        %v1578 = vld [vmem:[%s5 + $0x314] sm:$0xf]
        %v1579 = vld [vmem:[%s5 + $0x318] sm:$0xf]
        %v1580 = vld [vmem:[%s5 + $0x31c] sm:$0xf]
        %v1581 = vld [vmem:[%s5 + $0x320] sm:$0xf]
        %v1582 = vld [vmem:[%s5 + $0x324] sm:$0xf]
        %v1583 = vld [vmem:[%s5 + $0x328] sm:$0xf]
        %v1584 = vld [vmem:[%s5 + $0x32c] sm:$0xf]
        %v1585 = vld [vmem:[%s5 + $0x330] sm:$0xf]
        %v1586 = vld [vmem:[%s5 + $0x334] sm:$0xf]
        %v1587 = vld [vmem:[%s5 + $0x338] sm:$0xf]
        %v1588 = vld [vmem:[%s5 + $0x33c] sm:$0xf]
        %v1589 = vld [vmem:[%s5 + $0x340] sm:$0xf]
        %v1590 = vld [vmem:[%s5 + $0x344] sm:$0xf]
        %v1591 = vld [vmem:[%s5 + $0x348] sm:$0xf]
        %v1592 = vld [vmem:[%s5 + $0x34c] sm:$0xf]
        %v1593 = vld [vmem:[%s5 + $0x350] sm:$0xf]
        %v1594 = vld [vmem:[%s5 + $0x354] sm:$0xf]
        %v1595 = vld [vmem:[%s5 + $0x358] sm:$0xf]
        %v1596 = vld [vmem:[%s5 + $0x35c] sm:$0xf]
        %v1597 = vld [vmem:[%s5 + $0x360] sm:$0xf]
        %v1598 = vld [vmem:[%s5 + $0x364] sm:$0xf]
        %v1599 = vld [vmem:[%s5 + $0x368] sm:$0xf]
        %v1600 = vld [vmem:[%s5 + $0x36c] sm:$0xf]
        %v1601 = vld [vmem:[%s5 + $0x370] sm:$0xf]
        %v1602 = vld [vmem:[%s5 + $0x374] sm:$0xf]
        %v1603 = vld [vmem:[%s5 + $0x378] sm:$0xf]
        %v1604 = vld [vmem:[%s5 + $0x37c] sm:$0xf]
        %v1605 = vld [vmem:[%s5 + $0x380] sm:$0xf]
        %v1606 = vld [vmem:[%s5 + $0x384] sm:$0xf]
        %v1607 = vld [vmem:[%s5 + $0x388] sm:$0xf]
        %v1608 = vld [vmem:[%s5 + $0x38c] sm:$0xf]
        %v1609 = vld [vmem:[%s5 + $0x390] sm:$0xf]
        %v1610 = vld [vmem:[%s5 + $0x394] sm:$0xf]
        %v1611 = vld [vmem:[%s5 + $0x398] sm:$0xf]
        %v1612 = vld [vmem:[%s5 + $0x39c] sm:$0xf]
        %v1613 = vld [vmem:[%s5 + $0x3a0] sm:$0xf]
        %v1614 = vld [vmem:[%s5 + $0x3a4] sm:$0xf]
        %v1615 = vld [vmem:[%s5 + $0x3a8] sm:$0xf]
        %v1616 = vld [vmem:[%s5 + $0x3ac] sm:$0xf]
        %v1617 = vld [vmem:[%s5 + $0x3b0] sm:$0xf]
        %v1618 = vld [vmem:[%s5 + $0x3b4] sm:$0xf]
        %v1619 = vld [vmem:[%s5 + $0x3b8] sm:$0xf]
        %v1620 = vld [vmem:[%s5 + $0x3bc] sm:$0xf]
        %v1621 = vld [vmem:[%s5 + $0x3c0] sm:$0xf]
        %v1622 = vld [vmem:[%s5 + $0x3c4] sm:$0xf]
        %v1623 = vld [vmem:[%s5 + $0x3c8] sm:$0xf]
        %v1624 = vld [vmem:[%s5 + $0x3cc] sm:$0xf]
        %v1625 = vld [vmem:[%s5 + $0x3d0] sm:$0xf]
        %v1626 = vld [vmem:[%s5 + $0x3d4] sm:$0xf]
        %v1627 = vld [vmem:[%s5 + $0x3d8] sm:$0xf]
        %v1628 = vld [vmem:[%s5 + $0x3dc] sm:$0xf]
        %v1629 = vld [vmem:[%s5 + $0x3e0] sm:$0xf]
        %v1630 = vld [vmem:[%s5 + $0x3e4] sm:$0xf]
        %v1631 = vld [vmem:[%s5 + $0x3e8] sm:$0xf]
        %v1632 = vld [vmem:[%s5 + $0x3ec] sm:$0xf]
        %v1633 = vld [vmem:[%s5 + $0x3f0] sm:$0xf]
        %v1634 = vld [vmem:[%s5 + $0x3f4] sm:$0xf]
        %v1635 = vld [vmem:[%s5 + $0x3f8] sm:$0xf]
        %v1636 = vld [vmem:[%s5 + $0x3fc] sm:$0xf]
        %v1637 = vld [vmem:[%s6] sm:$0x1]
        %v1639 = vperm.slane %v1637, 0
        %v1897 = vunpack.c.l.b16 %v1381
        %v1898 = vunpack.c.l.b16 %v1382
        %v1899 = vunpack.c.l.b16 %v1383
        %v1900 = vunpack.c.l.b16 %v1384
        %v1901 = vunpack.c.l.b16 %v1385
        %v1902 = vunpack.c.l.b16 %v1386
        %v1903 = vunpack.c.l.b16 %v1387
        %v1904 = vunpack.c.l.b16 %v1388
        %v1905 = vunpack.c.l.b16 %v1389
        %v1906 = vunpack.c.l.b16 %v1390
        %v1907 = vunpack.c.l.b16 %v1391
        %v1908 = vunpack.c.l.b16 %v1392
        %v1909 = vunpack.c.l.b16 %v1393
        %v1910 = vunpack.c.l.b16 %v1394
        %v1911 = vunpack.c.l.b16 %v1395
        %v1912 = vunpack.c.l.b16 %v1396
        %v1913 = vunpack.c.l.b16 %v1397
        %v1914 = vunpack.c.l.b16 %v1398
        %v1915 = vunpack.c.l.b16 %v1399
        %v1916 = vunpack.c.l.b16 %v1400
        %v1917 = vunpack.c.l.b16 %v1401
        %v1918 = vunpack.c.l.b16 %v1402
        %v1919 = vunpack.c.l.b16 %v1403
        %v1920 = vunpack.c.l.b16 %v1404
        %v1921 = vunpack.c.l.b16 %v1405
        %v1922 = vunpack.c.l.b16 %v1406
        %v1923 = vunpack.c.l.b16 %v1407
        %v1924 = vunpack.c.l.b16 %v1408
        %v1925 = vunpack.c.l.b16 %v1409
        %v1926 = vunpack.c.l.b16 %v1410
        %v1927 = vunpack.c.l.b16 %v1411
        %v1928 = vunpack.c.l.b16 %v1412
        %v1929 = vunpack.c.l.b16 %v1413
        %v1930 = vunpack.c.l.b16 %v1414
        %v1931 = vunpack.c.l.b16 %v1415
        %v1932 = vunpack.c.l.b16 %v1416
        %v1933 = vunpack.c.l.b16 %v1417
        %v1934 = vunpack.c.l.b16 %v1418
        %v1935 = vunpack.c.l.b16 %v1419
        %v1936 = vunpack.c.l.b16 %v1420
        %v1937 = vunpack.c.l.b16 %v1421
        %v1938 = vunpack.c.l.b16 %v1422
        %v1939 = vunpack.c.l.b16 %v1423
        %v1940 = vunpack.c.l.b16 %v1424
        %v1941 = vunpack.c.l.b16 %v1425
        %v1942 = vunpack.c.l.b16 %v1426
        %v1943 = vunpack.c.l.b16 %v1427
        %v1944 = vunpack.c.l.b16 %v1428
        %v1945 = vunpack.c.l.b16 %v1429
        %v1946 = vunpack.c.l.b16 %v1430
        %v1947 = vunpack.c.l.b16 %v1431
        %v1948 = vunpack.c.l.b16 %v1432
        %v1949 = vunpack.c.l.b16 %v1433
        %v1950 = vunpack.c.l.b16 %v1434
        %v1951 = vunpack.c.l.b16 %v1435
        %v1952 = vunpack.c.l.b16 %v1436
        %v1953 = vunpack.c.l.b16 %v1437
        %v1954 = vunpack.c.l.b16 %v1438
        %v1955 = vunpack.c.l.b16 %v1439
        %v1956 = vunpack.c.l.b16 %v1440
        %v1957 = vunpack.c.l.b16 %v1441
        %v1958 = vunpack.c.l.b16 %v1442
        %v1959 = vunpack.c.l.b16 %v1443
        %v1960 = vunpack.c.l.b16 %v1444
        %v1961 = vunpack.c.l.b16 %v1445
        %v1962 = vunpack.c.l.b16 %v1446
        %v1963 = vunpack.c.l.b16 %v1447
        %v1964 = vunpack.c.l.b16 %v1448
        %v1965 = vunpack.c.l.b16 %v1449
        %v1966 = vunpack.c.l.b16 %v1450
        %v1967 = vunpack.c.l.b16 %v1451
        %v1968 = vunpack.c.l.b16 %v1452
        %v1969 = vunpack.c.l.b16 %v1453
        %v1970 = vunpack.c.l.b16 %v1454
        %v1971 = vunpack.c.l.b16 %v1455
        %v1972 = vunpack.c.l.b16 %v1456
        %v1973 = vunpack.c.l.b16 %v1457
        %v1974 = vunpack.c.l.b16 %v1458
        %v1975 = vunpack.c.l.b16 %v1459
        %v1976 = vunpack.c.l.b16 %v1460
        %v1977 = vunpack.c.l.b16 %v1461
        %v1978 = vunpack.c.l.b16 %v1462
        %v1979 = vunpack.c.l.b16 %v1463
        %v1980 = vunpack.c.l.b16 %v1464
        %v1981 = vunpack.c.l.b16 %v1465
        %v1982 = vunpack.c.l.b16 %v1466
        %v1983 = vunpack.c.l.b16 %v1467
        %v1984 = vunpack.c.l.b16 %v1468
        %v1985 = vunpack.c.l.b16 %v1469
        %v1986 = vunpack.c.l.b16 %v1470
        %v1987 = vunpack.c.l.b16 %v1471
        %v1988 = vunpack.c.l.b16 %v1472
        %v1989 = vunpack.c.l.b16 %v1473
        %v1990 = vunpack.c.l.b16 %v1474
        %v1991 = vunpack.c.l.b16 %v1475
        %v1992 = vunpack.c.l.b16 %v1476
        %v1993 = vunpack.c.l.b16 %v1477
        %v1994 = vunpack.c.l.b16 %v1478
        %v1995 = vunpack.c.l.b16 %v1479
        %v1996 = vunpack.c.l.b16 %v1480
        %v1997 = vunpack.c.l.b16 %v1481
        %v1998 = vunpack.c.l.b16 %v1482
        %v1999 = vunpack.c.l.b16 %v1483
        %v2000 = vunpack.c.l.b16 %v1484
        %v2001 = vunpack.c.l.b16 %v1485
        %v2002 = vunpack.c.l.b16 %v1486
        %v2003 = vunpack.c.l.b16 %v1487
        %v2004 = vunpack.c.l.b16 %v1488
        %v2005 = vunpack.c.l.b16 %v1489
        %v2006 = vunpack.c.l.b16 %v1490
        %v2007 = vunpack.c.l.b16 %v1491
        %v2008 = vunpack.c.l.b16 %v1492
        %v2009 = vunpack.c.l.b16 %v1493
        %v2010 = vunpack.c.l.b16 %v1494
        %v2011 = vunpack.c.l.b16 %v1495
        %v2012 = vunpack.c.l.b16 %v1496
        %v2013 = vunpack.c.l.b16 %v1497
        %v2014 = vunpack.c.l.b16 %v1498
        %v2015 = vunpack.c.l.b16 %v1499
        %v2016 = vunpack.c.l.b16 %v1500
        %v2017 = vunpack.c.l.b16 %v1501
        %v2018 = vunpack.c.l.b16 %v1502
        %v2019 = vunpack.c.l.b16 %v1503
        %v2020 = vunpack.c.l.b16 %v1504
        %v2021 = vunpack.c.l.b16 %v1505
        %v2022 = vunpack.c.l.b16 %v1506
        %v2023 = vunpack.c.l.b16 %v1507
        %v2024 = vunpack.c.l.b16 %v1508
        %v2025 = vunpack.c.l.b16 %v1509
        %v2026 = vunpack.c.l.b16 %v1510
        %v2027 = vunpack.c.l.b16 %v1511
        %v2028 = vunpack.c.l.b16 %v1512
        %v2029 = vunpack.c.l.b16 %v1513
        %v2030 = vunpack.c.l.b16 %v1514
        %v2031 = vunpack.c.l.b16 %v1515
        %v2032 = vunpack.c.l.b16 %v1516
        %v2033 = vunpack.c.l.b16 %v1517
        %v2034 = vunpack.c.l.b16 %v1518
        %v2035 = vunpack.c.l.b16 %v1519
        %v2036 = vunpack.c.l.b16 %v1520
        %v2037 = vunpack.c.l.b16 %v1521
        %v2038 = vunpack.c.l.b16 %v1522
        %v2039 = vunpack.c.l.b16 %v1523
        %v2040 = vunpack.c.l.b16 %v1524
        %v2041 = vunpack.c.l.b16 %v1525
        %v2042 = vunpack.c.l.b16 %v1526
        %v2043 = vunpack.c.l.b16 %v1527
        %v2044 = vunpack.c.l.b16 %v1528
        %v2045 = vunpack.c.l.b16 %v1529
        %v2046 = vunpack.c.l.b16 %v1530
        %v2047 = vunpack.c.l.b16 %v1531
        %v2048 = vunpack.c.l.b16 %v1532
        %v2049 = vunpack.c.l.b16 %v1533
        %v2050 = vunpack.c.l.b16 %v1534
        %v2051 = vunpack.c.l.b16 %v1535
        %v2052 = vunpack.c.l.b16 %v1536
        %v2053 = vunpack.c.l.b16 %v1537
        %v2054 = vunpack.c.l.b16 %v1538
        %v2055 = vunpack.c.l.b16 %v1539
        %v2056 = vunpack.c.l.b16 %v1540
        %v2057 = vunpack.c.l.b16 %v1541
        %v2058 = vunpack.c.l.b16 %v1542
        %v2059 = vunpack.c.l.b16 %v1543
        %v2060 = vunpack.c.l.b16 %v1544
        %v2061 = vunpack.c.l.b16 %v1545
        %v2062 = vunpack.c.l.b16 %v1546
        %v2063 = vunpack.c.l.b16 %v1547
        %v2064 = vunpack.c.l.b16 %v1548
        %v2065 = vunpack.c.l.b16 %v1549
        %v2066 = vunpack.c.l.b16 %v1550
        %v2067 = vunpack.c.l.b16 %v1551
        %v2068 = vunpack.c.l.b16 %v1552
        %v2069 = vunpack.c.l.b16 %v1553
        %v2070 = vunpack.c.l.b16 %v1554
        %v2071 = vunpack.c.l.b16 %v1555
        %v2072 = vunpack.c.l.b16 %v1556
        %v2073 = vunpack.c.l.b16 %v1557
        %v2074 = vunpack.c.l.b16 %v1558
        %v2075 = vunpack.c.l.b16 %v1559
        %v2076 = vunpack.c.l.b16 %v1560
        %v2077 = vunpack.c.l.b16 %v1561
        %v2078 = vunpack.c.l.b16 %v1562
        %v2079 = vunpack.c.l.b16 %v1563
        %v2080 = vunpack.c.l.b16 %v1564
        %v2081 = vunpack.c.l.b16 %v1565
        %v2082 = vunpack.c.l.b16 %v1566
        %v2083 = vunpack.c.l.b16 %v1567
        %v2084 = vunpack.c.l.b16 %v1568
        %v2085 = vunpack.c.l.b16 %v1569
        %v2086 = vunpack.c.l.b16 %v1570
        %v2087 = vunpack.c.l.b16 %v1571
        %v2088 = vunpack.c.l.b16 %v1572
        %v2089 = vunpack.c.l.b16 %v1573
        %v2090 = vunpack.c.l.b16 %v1574
        %v2091 = vunpack.c.l.b16 %v1575
        %v2092 = vunpack.c.l.b16 %v1576
        %v2093 = vunpack.c.l.b16 %v1577
        %v2094 = vunpack.c.l.b16 %v1578
        %v2095 = vunpack.c.l.b16 %v1579
        %v2096 = vunpack.c.l.b16 %v1580
        %v2097 = vunpack.c.l.b16 %v1581
        %v2098 = vunpack.c.l.b16 %v1582
        %v2099 = vunpack.c.l.b16 %v1583
        %v2100 = vunpack.c.l.b16 %v1584
        %v2101 = vunpack.c.l.b16 %v1585
        %v2102 = vunpack.c.l.b16 %v1586
        %v2103 = vunpack.c.l.b16 %v1587
        %v2104 = vunpack.c.l.b16 %v1588
        %v2105 = vunpack.c.l.b16 %v1589
        %v2106 = vunpack.c.l.b16 %v1590
        %v2107 = vunpack.c.l.b16 %v1591
        %v2108 = vunpack.c.l.b16 %v1592
        %v2109 = vunpack.c.l.b16 %v1593
        %v2110 = vunpack.c.l.b16 %v1594
        %v2111 = vunpack.c.l.b16 %v1595
        %v2112 = vunpack.c.l.b16 %v1596
        %v2113 = vunpack.c.l.b16 %v1597
        %v2114 = vunpack.c.l.b16 %v1598
        %v2115 = vunpack.c.l.b16 %v1599
        %v2116 = vunpack.c.l.b16 %v1600
        %v2117 = vunpack.c.l.b16 %v1601
        %v2118 = vunpack.c.l.b16 %v1602
        %v2119 = vunpack.c.l.b16 %v1603
        %v2120 = vunpack.c.l.b16 %v1604
        %v2121 = vunpack.c.l.b16 %v1605
        %v2122 = vunpack.c.l.b16 %v1606
        %v2123 = vunpack.c.l.b16 %v1607
        %v2124 = vunpack.c.l.b16 %v1608
        %v2125 = vunpack.c.l.b16 %v1609
        %v2126 = vunpack.c.l.b16 %v1610
        %v2127 = vunpack.c.l.b16 %v1611
        %v2128 = vunpack.c.l.b16 %v1612
        %v2129 = vunpack.c.l.b16 %v1613
        %v2130 = vunpack.c.l.b16 %v1614
        %v2131 = vunpack.c.l.b16 %v1615
        %v2132 = vunpack.c.l.b16 %v1616
        %v2133 = vunpack.c.l.b16 %v1617
        %v2134 = vunpack.c.l.b16 %v1618
        %v2135 = vunpack.c.l.b16 %v1619
        %v2136 = vunpack.c.l.b16 %v1620
        %v2137 = vunpack.c.l.b16 %v1621
        %v2138 = vunpack.c.l.b16 %v1622
        %v2139 = vunpack.c.l.b16 %v1623
        %v2140 = vunpack.c.l.b16 %v1624
        %v2141 = vunpack.c.l.b16 %v1625
        %v2142 = vunpack.c.l.b16 %v1626
        %v2143 = vunpack.c.l.b16 %v1627
        %v2144 = vunpack.c.l.b16 %v1628
        %v2145 = vunpack.c.l.b16 %v1629
        %v2146 = vunpack.c.l.b16 %v1630
        %v2147 = vunpack.c.l.b16 %v1631
        %v2148 = vunpack.c.l.b16 %v1632
        %v2149 = vunpack.c.l.b16 %v1633
        %v2150 = vunpack.c.l.b16 %v1634
        %v2151 = vunpack.c.l.b16 %v1635
        %v2152 = vunpack.c.l.b16 %v1636
        %v2153 = vpack.c.b16 %v1898, %v1897
        %v2154 = vpack.c.b16 %v1900, %v1899
        %v2155 = vpack.c.b16 %v1902, %v1901
        %v2156 = vpack.c.b16 %v1904, %v1903
        %v2157 = vpack.c.b16 %v1906, %v1905
        %v2158 = vpack.c.b16 %v1908, %v1907
        %v2159 = vpack.c.b16 %v1910, %v1909
        %v2160 = vpack.c.b16 %v1912, %v1911
        %v2161 = vpack.c.b16 %v1914, %v1913
        %v2162 = vpack.c.b16 %v1916, %v1915
        %v2163 = vpack.c.b16 %v1918, %v1917
        %v2164 = vpack.c.b16 %v1920, %v1919
        %v2165 = vpack.c.b16 %v1922, %v1921
        %v2166 = vpack.c.b16 %v1924, %v1923
        %v2167 = vpack.c.b16 %v1926, %v1925
        %v2168 = vpack.c.b16 %v1928, %v1927
        %v2169 = vpack.c.b16 %v1930, %v1929
        %v2170 = vpack.c.b16 %v1932, %v1931
        %v2171 = vpack.c.b16 %v1934, %v1933
        %v2172 = vpack.c.b16 %v1936, %v1935
        %v2173 = vpack.c.b16 %v1938, %v1937
        %v2174 = vpack.c.b16 %v1940, %v1939
        %v2175 = vpack.c.b16 %v1942, %v1941
        %v2176 = vpack.c.b16 %v1944, %v1943
        %v2177 = vpack.c.b16 %v1946, %v1945
        %v2178 = vpack.c.b16 %v1948, %v1947
        %v2179 = vpack.c.b16 %v1950, %v1949
        %v2180 = vpack.c.b16 %v1952, %v1951
        %v2181 = vpack.c.b16 %v1954, %v1953
        %v2182 = vpack.c.b16 %v1956, %v1955
        %v2183 = vpack.c.b16 %v1958, %v1957
        %v2184 = vpack.c.b16 %v1960, %v1959
        %v2185 = vpack.c.b16 %v1962, %v1961
        %v2186 = vpack.c.b16 %v1964, %v1963
        %v2187 = vpack.c.b16 %v1966, %v1965
        %v2188 = vpack.c.b16 %v1968, %v1967
        %v2189 = vpack.c.b16 %v1970, %v1969
        %v2190 = vpack.c.b16 %v1972, %v1971
        %v2191 = vpack.c.b16 %v1974, %v1973
        %v2192 = vpack.c.b16 %v1976, %v1975
        %v2193 = vpack.c.b16 %v1978, %v1977
        %v2194 = vpack.c.b16 %v1980, %v1979
        %v2195 = vpack.c.b16 %v1982, %v1981
        %v2196 = vpack.c.b16 %v1984, %v1983
        %v2197 = vpack.c.b16 %v1986, %v1985
        %v2198 = vpack.c.b16 %v1988, %v1987
        %v2199 = vpack.c.b16 %v1990, %v1989
        %v2200 = vpack.c.b16 %v1992, %v1991
        %v2201 = vpack.c.b16 %v1994, %v1993
        %v2202 = vpack.c.b16 %v1996, %v1995
        %v2203 = vpack.c.b16 %v1998, %v1997
        %v2204 = vpack.c.b16 %v2000, %v1999
        %v2205 = vpack.c.b16 %v2002, %v2001
        %v2206 = vpack.c.b16 %v2004, %v2003
        %v2207 = vpack.c.b16 %v2006, %v2005
        %v2208 = vpack.c.b16 %v2008, %v2007
        %v2209 = vpack.c.b16 %v2010, %v2009
        %v2210 = vpack.c.b16 %v2012, %v2011
        %v2211 = vpack.c.b16 %v2014, %v2013
        %v2212 = vpack.c.b16 %v2016, %v2015
        %v2213 = vpack.c.b16 %v2018, %v2017
        %v2214 = vpack.c.b16 %v2020, %v2019
        %v2215 = vpack.c.b16 %v2022, %v2021
        %v2216 = vpack.c.b16 %v2024, %v2023
        %v2217 = vpack.c.b16 %v2026, %v2025
        %v2218 = vpack.c.b16 %v2028, %v2027
        %v2219 = vpack.c.b16 %v2030, %v2029
        %v2220 = vpack.c.b16 %v2032, %v2031
        %v2221 = vpack.c.b16 %v2034, %v2033
        %v2222 = vpack.c.b16 %v2036, %v2035
        %v2223 = vpack.c.b16 %v2038, %v2037
        %v2224 = vpack.c.b16 %v2040, %v2039
        %v2225 = vpack.c.b16 %v2042, %v2041
        %v2226 = vpack.c.b16 %v2044, %v2043
        %v2227 = vpack.c.b16 %v2046, %v2045
        %v2228 = vpack.c.b16 %v2048, %v2047
        %v2229 = vpack.c.b16 %v2050, %v2049
        %v2230 = vpack.c.b16 %v2052, %v2051
        %v2231 = vpack.c.b16 %v2054, %v2053
        %v2232 = vpack.c.b16 %v2056, %v2055
        %v2233 = vpack.c.b16 %v2058, %v2057
        %v2234 = vpack.c.b16 %v2060, %v2059
        %v2235 = vpack.c.b16 %v2062, %v2061
        %v2236 = vpack.c.b16 %v2064, %v2063
        %v2237 = vpack.c.b16 %v2066, %v2065
        %v2238 = vpack.c.b16 %v2068, %v2067
        %v2239 = vpack.c.b16 %v2070, %v2069
        %v2240 = vpack.c.b16 %v2072, %v2071
        %v2241 = vpack.c.b16 %v2074, %v2073
        %v2242 = vpack.c.b16 %v2076, %v2075
        %v2243 = vpack.c.b16 %v2078, %v2077
        %v2244 = vpack.c.b16 %v2080, %v2079
        %v2245 = vpack.c.b16 %v2082, %v2081
        %v2246 = vpack.c.b16 %v2084, %v2083
        %v2247 = vpack.c.b16 %v2086, %v2085
        %v2248 = vpack.c.b16 %v2088, %v2087
        %v2249 = vpack.c.b16 %v2090, %v2089
        %v2250 = vpack.c.b16 %v2092, %v2091
        %v2251 = vpack.c.b16 %v2094, %v2093
        %v2252 = vpack.c.b16 %v2096, %v2095
        %v2253 = vpack.c.b16 %v2098, %v2097
        %v2254 = vpack.c.b16 %v2100, %v2099
        %v2255 = vpack.c.b16 %v2102, %v2101
        %v2256 = vpack.c.b16 %v2104, %v2103
        %v2257 = vpack.c.b16 %v2106, %v2105
        %v2258 = vpack.c.b16 %v2108, %v2107
        %v2259 = vpack.c.b16 %v2110, %v2109
        %v2260 = vpack.c.b16 %v2112, %v2111
        %v2261 = vpack.c.b16 %v2114, %v2113
        %v2262 = vpack.c.b16 %v2116, %v2115
        %v2263 = vpack.c.b16 %v2118, %v2117
        %v2264 = vpack.c.b16 %v2120, %v2119
        %v2265 = vpack.c.b16 %v2122, %v2121
        %v2266 = vpack.c.b16 %v2124, %v2123
        %v2267 = vpack.c.b16 %v2126, %v2125
        %v2268 = vpack.c.b16 %v2128, %v2127
        %v2269 = vpack.c.b16 %v2130, %v2129
        %v2270 = vpack.c.b16 %v2132, %v2131
        %v2271 = vpack.c.b16 %v2134, %v2133
        %v2272 = vpack.c.b16 %v2136, %v2135
        %v2273 = vpack.c.b16 %v2138, %v2137
        %v2274 = vpack.c.b16 %v2140, %v2139
        %v2275 = vpack.c.b16 %v2142, %v2141
        %v2276 = vpack.c.b16 %v2144, %v2143
        %v2277 = vpack.c.b16 %v2146, %v2145
        %v2278 = vpack.c.b16 %v2148, %v2147
        %v2279 = vpack.c.b16 %v2150, %v2149
        %v2280 = vpack.c.b16 %v2152, %v2151
        %2409 = vmatpush.bf16.msra.mxu0 %v2160
        %2410 = vmatpush.bf16.msra.mxu0 %v2159
        %2411 = vmatpush.bf16.msra.mxu0 %v2158
        %2412 = vmatpush.bf16.msra.mxu0 %v2157
        %2413 = vmatpush.bf16.msra.mxu0 %v2156
        %2414 = vmatpush.bf16.msra.mxu0 %v2155
        %2415 = vmatpush.bf16.msra.mxu0 %v2154
        %2416 = vmatpush.bf16.msra.mxu0 %v2153
        %2417 = vmatmul.bf16.gmra.mxu0 %v1365
        %v2418 = vpop.f32.mrf.mxu0
        %v2419 = vadd.f32 %v1639, %v2418
        %v2420 = vpop.f32.mrf.mxu0
        %2421 = vdwg.mxu0
        %2422 = vmatpush.bf16.msra.mxu0 %v2168
        %2423 = vmatpush.bf16.msra.mxu0 %v2167
        %2424 = vmatpush.bf16.msra.mxu0 %v2166
        %2425 = vmatpush.bf16.msra.mxu0 %v2165
        %2426 = vmatpush.bf16.msra.mxu0 %v2164
        %2427 = vmatpush.bf16.msra.mxu0 %v2163
        %2428 = vmatpush.bf16.msra.mxu0 %v2162
        %2429 = vmatpush.bf16.msra.mxu0 %v2161
        %2430 = vmatmul.bf16.gmra.mxu0 %v1366
        %v2431 = vpop.f32.mrf.mxu0
        %v2432 = vadd.f32 %v2419, %v2431
        %v2433 = vpop.f32.mrf.mxu0
        %2434 = vdwg.mxu0
        %2435 = vmatpush.bf16.msra.mxu0 %v2176
        %2436 = vmatpush.bf16.msra.mxu0 %v2175
        %2437 = vmatpush.bf16.msra.mxu0 %v2174
        %2438 = vmatpush.bf16.msra.mxu0 %v2173
        %2439 = vmatpush.bf16.msra.mxu0 %v2172
        %2440 = vmatpush.bf16.msra.mxu0 %v2171
        %2441 = vmatpush.bf16.msra.mxu0 %v2170
        %2442 = vmatpush.bf16.msra.mxu0 %v2169
        %2443 = vmatmul.bf16.gmra.mxu0 %v1367
        %v2444 = vpop.f32.mrf.mxu0
        %v2445 = vadd.f32 %v2432, %v2444
        %v2446 = vpop.f32.mrf.mxu0
        %2447 = vdwg.mxu0
        %2448 = vmatpush.bf16.msra.mxu0 %v2184
        %2449 = vmatpush.bf16.msra.mxu0 %v2183
        %2450 = vmatpush.bf16.msra.mxu0 %v2182
        %2451 = vmatpush.bf16.msra.mxu0 %v2181
        %2452 = vmatpush.bf16.msra.mxu0 %v2180
        %2453 = vmatpush.bf16.msra.mxu0 %v2179
        %2454 = vmatpush.bf16.msra.mxu0 %v2178
        %2455 = vmatpush.bf16.msra.mxu0 %v2177
        %2456 = vmatmul.bf16.gmra.mxu0 %v1368
        %v2457 = vpop.f32.mrf.mxu0
        %v2458 = vadd.f32 %v2445, %v2457
        %v2459 = vpop.f32.mrf.mxu0
        %2460 = vdwg.mxu0
        %2461 = vmatpush.bf16.msra.mxu0 %v2192
        %2462 = vmatpush.bf16.msra.mxu0 %v2191
        %2463 = vmatpush.bf16.msra.mxu0 %v2190
        %2464 = vmatpush.bf16.msra.mxu0 %v2189
        %2465 = vmatpush.bf16.msra.mxu0 %v2188
        %2466 = vmatpush.bf16.msra.mxu0 %v2187
        %2467 = vmatpush.bf16.msra.mxu0 %v2186
        %2468 = vmatpush.bf16.msra.mxu0 %v2185
        %2469 = vmatmul.bf16.gmra.mxu0 %v1369
        %v2470 = vpop.f32.mrf.mxu0
        %v2471 = vadd.f32 %v2458, %v2470
        %v2472 = vpop.f32.mrf.mxu0
        %2473 = vdwg.mxu0
        %2474 = vmatpush.bf16.msra.mxu0 %v2200
        %2475 = vmatpush.bf16.msra.mxu0 %v2199
        %2476 = vmatpush.bf16.msra.mxu0 %v2198
        %2477 = vmatpush.bf16.msra.mxu0 %v2197
        %2478 = vmatpush.bf16.msra.mxu0 %v2196
        %2479 = vmatpush.bf16.msra.mxu0 %v2195
        %2480 = vmatpush.bf16.msra.mxu0 %v2194
        %2481 = vmatpush.bf16.msra.mxu0 %v2193
        %2482 = vmatmul.bf16.gmra.mxu0 %v1370
        %v2483 = vpop.f32.mrf.mxu0
        %v2484 = vadd.f32 %v2471, %v2483
        %v2485 = vpop.f32.mrf.mxu0
        %2486 = vdwg.mxu0
        %2487 = vmatpush.bf16.msra.mxu0 %v2208
        %2488 = vmatpush.bf16.msra.mxu0 %v2207
        %2489 = vmatpush.bf16.msra.mxu0 %v2206
        %2490 = vmatpush.bf16.msra.mxu0 %v2205
        %2491 = vmatpush.bf16.msra.mxu0 %v2204
        %2492 = vmatpush.bf16.msra.mxu0 %v2203
        %2493 = vmatpush.bf16.msra.mxu0 %v2202
        %2494 = vmatpush.bf16.msra.mxu0 %v2201
        %2495 = vmatmul.bf16.gmra.mxu0 %v1371
        %v2496 = vpop.f32.mrf.mxu0
        %v2497 = vadd.f32 %v2484, %v2496
        %v2498 = vpop.f32.mrf.mxu0
        %2499 = vdwg.mxu0
        %2500 = vmatpush.bf16.msra.mxu0 %v2216
        %2501 = vmatpush.bf16.msra.mxu0 %v2215
        %2502 = vmatpush.bf16.msra.mxu0 %v2214
        %2503 = vmatpush.bf16.msra.mxu0 %v2213
        %2504 = vmatpush.bf16.msra.mxu0 %v2212
        %2505 = vmatpush.bf16.msra.mxu0 %v2211
        %2506 = vmatpush.bf16.msra.mxu0 %v2210
        %2507 = vmatpush.bf16.msra.mxu0 %v2209
        %2508 = vmatmul.bf16.gmra.mxu0 %v1372
        %v2509 = vpop.f32.mrf.mxu0
        %v2510 = vadd.f32 %v2497, %v2509
        %v2511 = vpop.f32.mrf.mxu0
        %2512 = vdwg.mxu0
        %2513 = vmatpush.bf16.msra.mxu0 %v2224
        %2514 = vmatpush.bf16.msra.mxu0 %v2223
        %2515 = vmatpush.bf16.msra.mxu0 %v2222
        %2516 = vmatpush.bf16.msra.mxu0 %v2221
        %2517 = vmatpush.bf16.msra.mxu0 %v2220
        %2518 = vmatpush.bf16.msra.mxu0 %v2219
        %2519 = vmatpush.bf16.msra.mxu0 %v2218
        %2520 = vmatpush.bf16.msra.mxu0 %v2217
        %2521 = vmatmul.bf16.gmra.mxu0 %v1373
        %v2522 = vpop.f32.mrf.mxu0
        %v2523 = vadd.f32 %v2510, %v2522
        %v2524 = vpop.f32.mrf.mxu0
        %2525 = vdwg.mxu0
        %2526 = vmatpush.bf16.msra.mxu0 %v2232
        %2527 = vmatpush.bf16.msra.mxu0 %v2231
        %2528 = vmatpush.bf16.msra.mxu0 %v2230
        %2529 = vmatpush.bf16.msra.mxu0 %v2229
        %2530 = vmatpush.bf16.msra.mxu0 %v2228
        %2531 = vmatpush.bf16.msra.mxu0 %v2227
        %2532 = vmatpush.bf16.msra.mxu0 %v2226
        %2533 = vmatpush.bf16.msra.mxu0 %v2225
        %2534 = vmatmul.bf16.gmra.mxu0 %v1374
        %v2535 = vpop.f32.mrf.mxu0
        %v2536 = vadd.f32 %v2523, %v2535
        %v2537 = vpop.f32.mrf.mxu0
        %2538 = vdwg.mxu0
        %2539 = vmatpush.bf16.msra.mxu0 %v2240
        %2540 = vmatpush.bf16.msra.mxu0 %v2239
        %2541 = vmatpush.bf16.msra.mxu0 %v2238
        %2542 = vmatpush.bf16.msra.mxu0 %v2237
        %2543 = vmatpush.bf16.msra.mxu0 %v2236
        %2544 = vmatpush.bf16.msra.mxu0 %v2235
        %2545 = vmatpush.bf16.msra.mxu0 %v2234
        %2546 = vmatpush.bf16.msra.mxu0 %v2233
        %2547 = vmatmul.bf16.gmra.mxu0 %v1375
        %v2548 = vpop.f32.mrf.mxu0
        %v2549 = vadd.f32 %v2536, %v2548
        %v2550 = vpop.f32.mrf.mxu0
        %2551 = vdwg.mxu0
        %2552 = vmatpush.bf16.msra.mxu0 %v2248
        %2553 = vmatpush.bf16.msra.mxu0 %v2247
        %2554 = vmatpush.bf16.msra.mxu0 %v2246
        %2555 = vmatpush.bf16.msra.mxu0 %v2245
        %2556 = vmatpush.bf16.msra.mxu0 %v2244
        %2557 = vmatpush.bf16.msra.mxu0 %v2243
        %2558 = vmatpush.bf16.msra.mxu0 %v2242
        %2559 = vmatpush.bf16.msra.mxu0 %v2241
        %2560 = vmatmul.bf16.gmra.mxu0 %v1376
        %v2561 = vpop.f32.mrf.mxu0
        %v2562 = vadd.f32 %v2549, %v2561
        %v2563 = vpop.f32.mrf.mxu0
        %2564 = vdwg.mxu0
        %2565 = vmatpush.bf16.msra.mxu0 %v2256
        %2566 = vmatpush.bf16.msra.mxu0 %v2255
        %2567 = vmatpush.bf16.msra.mxu0 %v2254
        %2568 = vmatpush.bf16.msra.mxu0 %v2253
        %2569 = vmatpush.bf16.msra.mxu0 %v2252
        %2570 = vmatpush.bf16.msra.mxu0 %v2251
        %2571 = vmatpush.bf16.msra.mxu0 %v2250
        %2572 = vmatpush.bf16.msra.mxu0 %v2249
        %2573 = vmatmul.bf16.gmra.mxu0 %v1377
        %v2574 = vpop.f32.mrf.mxu0
        %v2575 = vadd.f32 %v2562, %v2574
        %v2576 = vpop.f32.mrf.mxu0
        %2577 = vdwg.mxu0
        %2578 = vmatpush.bf16.msra.mxu0 %v2264
        %2579 = vmatpush.bf16.msra.mxu0 %v2263
        %2580 = vmatpush.bf16.msra.mxu0 %v2262
        %2581 = vmatpush.bf16.msra.mxu0 %v2261
        %2582 = vmatpush.bf16.msra.mxu0 %v2260
        %2583 = vmatpush.bf16.msra.mxu0 %v2259
        %2584 = vmatpush.bf16.msra.mxu0 %v2258
        %2585 = vmatpush.bf16.msra.mxu0 %v2257
        %2586 = vmatmul.bf16.gmra.mxu0 %v1378
        %v2587 = vpop.f32.mrf.mxu0
        %v2588 = vadd.f32 %v2575, %v2587
        %v2589 = vpop.f32.mrf.mxu0
        %2590 = vdwg.mxu0
        %2591 = vmatpush.bf16.msra.mxu0 %v2272
        %2592 = vmatpush.bf16.msra.mxu0 %v2271
        %2593 = vmatpush.bf16.msra.mxu0 %v2270
        %2594 = vmatpush.bf16.msra.mxu0 %v2269
        %2595 = vmatpush.bf16.msra.mxu0 %v2268
        %2596 = vmatpush.bf16.msra.mxu0 %v2267
        %2597 = vmatpush.bf16.msra.mxu0 %v2266
        %2598 = vmatpush.bf16.msra.mxu0 %v2265
        %2599 = vmatmul.bf16.gmra.mxu0 %v1379
        %v2600 = vpop.f32.mrf.mxu0
        %v2601 = vadd.f32 %v2588, %v2600
        %v2602 = vpop.f32.mrf.mxu0
        %2603 = vdwg.mxu0
        %2604 = vmatpush.bf16.msra.mxu0 %v2280
        %2605 = vmatpush.bf16.msra.mxu0 %v2279
        %2606 = vmatpush.bf16.msra.mxu0 %v2278
        %2607 = vmatpush.bf16.msra.mxu0 %v2277
        %2608 = vmatpush.bf16.msra.mxu0 %v2276
        %2609 = vmatpush.bf16.msra.mxu0 %v2275
        %2610 = vmatpush.bf16.msra.mxu0 %v2274
        %2611 = vmatpush.bf16.msra.mxu0 %v2273
        %2612 = vmatmul.bf16.gmra.mxu0 %v1380
        %v2613 = vpop.f32.mrf.mxu0
        %v2614 = vadd.f32 %v2601, %v2613
        %v2615 = vpop.f32.mrf.mxu0
        %2616 = vdwg.mxu0
        %2617 = vst [vmem:[%s274] sm:$0xf] %v2614
        %s2618 = sand.u32 %s181, 1
        %s2619 = scalar_lea.sflag [#allocation6], %s2618
        %s2620 = sand.u32 %s181, 1
        %s2621 = smul.addr %s2620, 4
        %s2622 = scalar_lea.vmem [#allocation5], %s2621
        // Predicated region
        $region49: #{encoder_2d_forward.1} parent=47 // pred_check
          %p2623 = pneg %p191
        $region50: #{encoder_2d_forward.1} parent=47 // pred_check_branch
          %2625 = sbr.rel (%p2623) target = $region52
        $region51: #{encoder_2d_forward.1} parent=47 // pred_region
          %2627 = vsyncadd %s2619, 0
          %s2628 = smul.addr %s21, 4
          %s2629 = scalar_lea.hbm %s7, %s2628
          %s2631 = sshll.u32 %s2622, 4
          %s2632 = int_to_ptr.vmem [resolvable:$true] %s2631
          %s2633 = sshll.u32 %s2629, 4
          %s2634 = int_to_ptr.hbm [resolvable:$true] %s2633
          %2636 = dma.vmem_to_hbm [thread:$0]  %s2632, 64, %s2634, %s2619
        $region52: #{encoder_2d_forward.1} parent=47 // pred_fallthru
          _
      $region48: #{encoder_2d_forward.1} parent=5 // pred_fallthru
        _
      %p2637 = scmp.le.s32.totalorder 2, %s16
      // Predicated region
      $region53: #{encoder_2d_forward.1} parent=5 // pred_check
        %p2638 = pneg %p2637
      $region54: #{encoder_2d_forward.1} parent=5 // pred_check_branch
        %2640 = sbr.rel (%p2638) target = $region56
      $region55: #{encoder_2d_forward.1} parent=5 // pred_region
        %s2641 = ssub.s32 %s16, 2
        // Predicated region
        $region57: #{encoder_2d_forward.1} parent=55 // pred_check
          %p2642 = pneg %p197
        $region58: #{encoder_2d_forward.1} parent=55 // pred_check_branch
          %2644 = sbr.rel (%p2642) target = $region60
        $region59: #{encoder_2d_forward.1} parent=55 // pred_region
          %s2645 = sand.u32 %s182, 1
          %s2646 = scalar_lea.sflag [#allocation6], %s2645
          %s2647 = sand.u32 %s182, 1
          %s2648 = smul.addr %s2647, 4
          %s2649 = scalar_lea.vmem [#allocation5], %s2648
          %2651 = dma.done %s2646, 64
        $region60: #{encoder_2d_forward.1} parent=55 // pred_fallthru
          _
      $region56: #{encoder_2d_forward.1} parent=5 // pred_fallthru
        _
    $region6: #{encoder_2d_forward.1} parent=1 // loop_footer
      %s20 = sadd.s32 1, %s16
    $region7: #{encoder_2d_forward.1} parent=1 // loop_footer_branch
      %15 = sbr.rel target = $region3
    $region8: #{encoder_2d_forward.1} parent=1 // loop_exit
      _
    %2652 = vsyncpa [#allocation6], 1
    %s2653 = scalar_lea.sflag [#allocation6], 1
    %2654 = vsyncpa %s2653, 1

</llo_original>
